<compile_context>
chip_gen: v6e
topology: v6e:2x2x1
jax: 0.10.0
libtpu: 0.0.40
codegen_flags: <defaults>
</compile_context>

<pallas_src>
import math

import jax
import jax.numpy as jnp
from jax.experimental import pallas as pl
from jax.experimental.pallas import tpu as pltpu

IN_FEATURES = 1600
H1, H2 = 100, 50
H1P, H2P = 128, 128   # hidden dims zero-padded to the 128-lane boundary
TB_CAP = 2048         # batch-tile cap: 2 * tb * 1600 * 2 B ~= 12.5 MiB of x double-buffer


def mlp_kernel(x_ref, w1_ref, b1_ref, w2_ref, b2_ref, w3_ref, b3_ref, o_ref):
    # layer1 + ReLU : [TB,1600]bf16 @ [1600,128]bf16 -> [TB,128]f32 (MXU, f32 acc)
    h1 = jnp.dot(x_ref[...], w1_ref[...], preferred_element_type=jnp.float32)
    h1 = jnp.maximum(h1 + b1_ref[...], 0.0)

    # layer2 + ReLU : [TB,128] @ [128,128] -> [TB,128]
    h2 = jnp.dot(h1.astype(jnp.bfloat16), w2_ref[...],
                 preferred_element_type=jnp.float32)
    h2 = jnp.maximum(h2 + b2_ref[...], 0.0)

    # output_layer (50 -> 1) + Sigmoid.  An N=1 MXU matmul wastes the systolic
    # array, so do it as a VPU multiply + XLU lane reduction against the (1,128)
    # zero-padded weight row; the scalar bias comes from SMEM.  keepdims keeps
    # the result as a (TB,1) column so the store needs no sublane->lane relayout.
    logits = jnp.sum(h2 * w3_ref[...], axis=-1, keepdims=True) + b3_ref[0, 0]
    o_ref[...] = jax.nn.sigmoid(logits)


def _cdiv(a, b):
    return -(-a // b)


def _round_up(n, m):
    return ((n + m - 1) // m) * m


def _choose_tiling(batch):
    """Batch-tile size / grid size / VMEM budget (generation-independent).

    tb <= 2048 keeps double-buffered bf16 x tiles (~12.5 MiB) + resident weights
    (<0.5 MiB) + f32 h1/h2 temporaries (~2 MiB) well under 64 MiB (v7x VMEM);
    the >=2-tiles rule keeps both v7x TensorCores fed and is harmless on the
    single-TC v5e/v6e (512+-row tiles already sit near the HBM roofline).
    """
    tb = max(128, min(TB_CAP, _round_up(_cdiv(max(batch, 1), 2), 128)))
    num_tiles = _cdiv(batch, tb)
    vmem_limit = 2 * tb * IN_FEATURES * 2 + (24 << 20)  # footprint + headroom
    return tb, num_tiles, int(vmem_limit)


def prepare_params(w1, b1, w2, b2, w3, b3):
    """One-time prep: zero-pad hidden dims to 128 lanes, cast matmul weights to bf16."""
    w1p = jnp.pad(w1, ((0, 0), (0, H1P - w1.shape[1]))).astype(jnp.bfloat16)
    b1p = jnp.pad(b1.reshape(1, -1), ((0, 0), (0, H1P - b1.size))).astype(jnp.float32)
    w2p = jnp.pad(w2, ((0, H1P - w2.shape[0]), (0, H2P - w2.shape[1]))).astype(jnp.bfloat16)
    b2p = jnp.pad(b2.reshape(1, -1), ((0, 0), (0, H2P - b2.size))).astype(jnp.float32)
    # Final 50->1 layer runs on the VPU, so store its weight as an f32 row vector.
    w3p = jnp.pad(w3.reshape(1, -1), ((0, 0), (0, H2P - w3.size))).astype(jnp.float32)
    b3p = jnp.asarray(b3, jnp.float32).reshape(1, 1)
    return w1p, b1p, w2p, b2p, w3p, b3p


def logistic_regression_forward(x, params, *, tb=None):
    w1p, b1p, w2p, b2p, w3p, b3p = params
    B = x.shape[0]
    if x.dtype != jnp.bfloat16:
        # Prefer producing bf16 at the source (upstream producer) so this cast
        # never materializes as a separate HBM pass; kept only as a safety net.
        x = x.astype(jnp.bfloat16)

    auto_tb, num_tiles, vmem_limit = _choose_tiling(B)
    if tb is None:
        tb = auto_tb
    else:
        num_tiles = _cdiv(B, tb)
        vmem_limit = 2 * tb * IN_FEATURES * 2 + (24 << 20)

    out = pl.pallas_call(
        mlp_kernel,
        out_shape=jax.ShapeDtypeStruct((B, 1), jnp.float32),
        grid=(num_tiles,),
        in_specs=[
            # x tiles stream through the default double-buffered pipeline; the
            # ragged last block (B % tb) is masked automatically by Pallas.
            pl.BlockSpec((tb, IN_FEATURES), lambda i: (i, 0)),
            # weights/biases map to block (0,0) every step, so they are DMA'd
            # once and stay resident in VMEM across all grid steps.
            pl.BlockSpec((IN_FEATURES, H1P), lambda i: (0, 0)),
            pl.BlockSpec((1, H1P), lambda i: (0, 0)),
            pl.BlockSpec((H1P, H2P), lambda i: (0, 0)),
            pl.BlockSpec((1, H2P), lambda i: (0, 0)),
            pl.BlockSpec((1, H2P), lambda i: (0, 0)),
            # scalar output bias lives in SMEM instead of a padded VMEM tile
            pl.BlockSpec(memory_space=pltpu.MemorySpace.SMEM),
        ],
        out_specs=pl.BlockSpec((tb, 1), lambda i: (i, 0)),
        compiler_params=pltpu.CompilerParams(
            dimension_semantics=("parallel",),   # shard batch tiles across TCs
            vmem_limit_bytes=vmem_limit,
        ),
    )(x, w1p, b1p, w2p, b2p, w3p, b3p)
    return out


def init_linear(key, fan_in, fan_out):
    # Deterministic init mimicking nn.Linear default (uniform in +/- 1/sqrt(fan_in)).
    kw, kb = jax.random.split(key)
    bound = 1.0 / math.sqrt(fan_in)
    w = jax.random.uniform(kw, (fan_in, fan_out), jnp.float32, -bound, bound)
    b = jax.random.uniform(kb, (1, fan_out), jnp.float32, -bound, bound)
    return w, b


def reference_forward(x, w1, b1, w2, b2, w3, b3):
    # Plain-JAX reference mirroring the kernel's bf16-operand / f32-accumulate numerics.
    h1 = jnp.dot(x.astype(jnp.bfloat16), w1.astype(jnp.bfloat16),
                 preferred_element_type=jnp.float32)
    h1 = jnp.maximum(h1 + b1, 0.0)
    h2 = jnp.dot(h1.astype(jnp.bfloat16), w2.astype(jnp.bfloat16),
                 preferred_element_type=jnp.float32)
    h2 = jnp.maximum(h2 + b2, 0.0)
    return jax.nn.sigmoid(h2 @ w3 + b3)


if __name__ == "__main__":
    key = jax.random.PRNGKey(0)
    kx, k1, k2, k3 = jax.random.split(key, 4)

    B = 8
    # x is produced as bf16 at the source (the kernel streams bf16 activations).
    x = jax.random.normal(kx, (B, 1600), jnp.bfloat16)

    w1, b1 = init_linear(k1, 1600, 100)
    w2, b2 = init_linear(k2, 100, 50)
    w3, b3 = init_linear(k3, 50, 1)

    params = prepare_params(w1, b1, w2, b2, w3, b3)
    out = logistic_regression_forward(x, params)
    out = jax.block_until_ready(out)

    ref = reference_forward(x, w1, b1, w2, b2, w3, b3)
    assert out.shape == (B, 1)
    assert jnp.allclose(out, ref, atol=2e-3, rtol=0), float(jnp.max(jnp.abs(out - ref)))

    print("KERNEL_OK")
</pallas_src>

<mosaic_0001>
module attributes {stable_mosaic.version = 11 : i64} {
  func.func @mlp_kernel(%arg0: i32, %arg1: memref<128x1600xbf16, #tpu.memory_space<vmem>>, %arg2: memref<1600x128xbf16, #tpu.memory_space<vmem>>, %arg3: memref<1x128xf32, #tpu.memory_space<vmem>>, %arg4: memref<128x128xbf16, #tpu.memory_space<vmem>>, %arg5: memref<1x128xf32, #tpu.memory_space<vmem>>, %arg6: memref<1x128xf32, #tpu.memory_space<vmem>>, %arg7: memref<1x1xf32, #tpu.memory_space<smem>>, %arg8: memref<128x1xf32, #tpu.memory_space<vmem>>) attributes {dimension_semantics = [#tpu.dimension_semantics<parallel>], iteration_bounds = array<i64: 1>, scalar_prefetch = 0 : i64, scratch_operands = 0 : i64, tpu.core_type = #tpu.core_type<tc>, window_params = [{transform_indices = @transform_0, window_bounds = array<i64: 128, 1600>}, {pipeline_mode = #tpu.pipeline_mode<synchronous>, transform_indices = @transform_1, window_bounds = array<i64: 1600, 128>}, {pipeline_mode = #tpu.pipeline_mode<synchronous>, transform_indices = @transform_2, window_bounds = array<i64: 1, 128>}, {pipeline_mode = #tpu.pipeline_mode<synchronous>, transform_indices = @transform_3, window_bounds = array<i64: 128, 128>}, {pipeline_mode = #tpu.pipeline_mode<synchronous>, transform_indices = @transform_4, window_bounds = array<i64: 1, 128>}, {pipeline_mode = #tpu.pipeline_mode<synchronous>, transform_indices = @transform_5, window_bounds = array<i64: 1, 128>}, {transform_indices = @transform_6, window_bounds = array<i64: 1, 1>}, {transform_indices = @transform_7, window_bounds = array<i64: 128, 1>}]} {
    %c0 = arith.constant 0 : index
    %c0_0 = arith.constant 0 : index
    %0 = vector.load %arg1[%c0, %c0_0] : memref<128x1600xbf16, #tpu.memory_space<vmem>>, vector<128x1600xbf16>
    %c0_1 = arith.constant 0 : index
    %c0_2 = arith.constant 0 : index
    %1 = vector.load %arg2[%c0_1, %c0_2] : memref<1600x128xbf16, #tpu.memory_space<vmem>>, vector<1600x128xbf16>
    %cst = arith.constant dense<0.000000e+00> : vector<128x128xf32>
    %2 = tpu.matmul %0, %1, %cst {dimension_numbers = #tpu.dot_dimension_numbers<[1], [0], [0], [1], [0, 0, 1, 1], [], []>} : vector<128x1600xbf16>, vector<1600x128xbf16>, vector<128x128xf32> -> vector<128x128xf32>
    %c0_3 = arith.constant 0 : index
    %c0_4 = arith.constant 0 : index
    %3 = vector.load %arg3[%c0_3, %c0_4] : memref<1x128xf32, #tpu.memory_space<vmem>>, vector<1x128xf32>
    %4 = vector.broadcast %3 : vector<1x128xf32> to vector<128x128xf32>
    %5 = arith.addf %2, %4 : vector<128x128xf32>
    %cst_5 = arith.constant 0.000000e+00 : f32
    %6 = vector.broadcast %cst_5 : f32 to vector<128x128xf32>
    %7 = arith.maximumf %5, %6 : vector<128x128xf32>
    %8 = arith.truncf %7 : vector<128x128xf32> to vector<128x128xbf16>
    %c0_6 = arith.constant 0 : index
    %c0_7 = arith.constant 0 : index
    %9 = vector.load %arg4[%c0_6, %c0_7] : memref<128x128xbf16, #tpu.memory_space<vmem>>, vector<128x128xbf16>
    %cst_8 = arith.constant dense<0.000000e+00> : vector<128x128xf32>
    %10 = tpu.matmul %8, %9, %cst_8 {dimension_numbers = #tpu.dot_dimension_numbers<[1], [0], [0], [1], [0, 0, 1, 1], [], []>} : vector<128x128xbf16>, vector<128x128xbf16>, vector<128x128xf32> -> vector<128x128xf32>
    %c0_9 = arith.constant 0 : index
    %c0_10 = arith.constant 0 : index
    %11 = vector.load %arg5[%c0_9, %c0_10] : memref<1x128xf32, #tpu.memory_space<vmem>>, vector<1x128xf32>
    %12 = vector.broadcast %11 : vector<1x128xf32> to vector<128x128xf32>
    %13 = arith.addf %10, %12 : vector<128x128xf32>
    %cst_11 = arith.constant 0.000000e+00 : f32
    %14 = vector.broadcast %cst_11 : f32 to vector<128x128xf32>
    %15 = arith.maximumf %13, %14 : vector<128x128xf32>
    %c0_12 = arith.constant 0 : index
    %c0_13 = arith.constant 0 : index
    %16 = vector.load %arg6[%c0_12, %c0_13] : memref<1x128xf32, #tpu.memory_space<vmem>>, vector<1x128xf32>
    %17 = vector.broadcast %16 : vector<1x128xf32> to vector<128x128xf32>
    %18 = arith.mulf %15, %17 : vector<128x128xf32>
    %cst_14 = arith.constant dense<0.000000e+00> : vector<128xf32>
    %19 = vector.multi_reduction <add>, %18, %cst_14 [1] : vector<128x128xf32> to vector<128xf32>
    %20 = vector.shape_cast %19 : vector<128xf32> to vector<128x1xf32>
    %c0_15 = arith.constant 0 : index
    %c0_16 = arith.constant 0 : index
    %21 = memref.load %arg7[%c0_15, %c0_16] : memref<1x1xf32, #tpu.memory_space<smem>>
    %22 = vector.broadcast %21 : f32 to vector<128x1xf32>
    %23 = arith.addf %20, %22 : vector<128x1xf32>
    %24 = arith.negf %23 : vector<128x1xf32>
    %25 = math.exp %24 : vector<128x1xf32>
    %cst_17 = arith.constant 1.000000e+00 : f32
    %26 = vector.broadcast %cst_17 : f32 to vector<128x1xf32>
    %27 = arith.addf %26, %25 : vector<128x1xf32>
    %28 = arith.divf %26, %27 : vector<128x1xf32>
    %c0_18 = arith.constant 0 : index
    %c0_19 = arith.constant 0 : index
    %29 = vector.load %arg8[%c0_18, %c0_19] : memref<128x1xf32, #tpu.memory_space<vmem>>, vector<128x1xf32>
    tpu.vector_store %arg8[%c0_18, %c0_19], %28 {strides = array<i32>} : memref<128x1xf32, #tpu.memory_space<vmem>>, vector<128x1xf32>,
    return
  }
  func.func @transform_0(%arg0: i32) -> (i32, i32) {
    %c0_i32 = arith.constant 0 : i32
    %c0_i32_0 = arith.constant 0 : i32
    return %arg0, %c0_i32 : i32, i32
  }
  func.func @transform_1(%arg0: i32) -> (i32, i32) {
    %c0_i32 = arith.constant 0 : i32
    %c0_i32_0 = arith.constant 0 : i32
    %c0_i32_1 = arith.constant 0 : i32
    return %c0_i32, %c0_i32_0 : i32, i32
  }
  func.func @transform_2(%arg0: i32) -> (i32, i32) {
    %c0_i32 = arith.constant 0 : i32
    %c0_i32_0 = arith.constant 0 : i32
    %c0_i32_1 = arith.constant 0 : i32
    return %c0_i32, %c0_i32_0 : i32, i32
  }
  func.func @transform_3(%arg0: i32) -> (i32, i32) {
    %c0_i32 = arith.constant 0 : i32
    %c0_i32_0 = arith.constant 0 : i32
    %c0_i32_1 = arith.constant 0 : i32
    return %c0_i32, %c0_i32_0 : i32, i32
  }
  func.func @transform_4(%arg0: i32) -> (i32, i32) {
    %c0_i32 = arith.constant 0 : i32
    %c0_i32_0 = arith.constant 0 : i32
    %c0_i32_1 = arith.constant 0 : i32
    return %c0_i32, %c0_i32_0 : i32, i32
  }
  func.func @transform_5(%arg0: i32) -> (i32, i32) {
    %c0_i32 = arith.constant 0 : i32
    %c0_i32_0 = arith.constant 0 : i32
    %c0_i32_1 = arith.constant 0 : i32
    return %c0_i32, %c0_i32_0 : i32, i32
  }
  func.func @transform_6(%arg0: i32) -> (i32, i32) {
    %c0_i32 = arith.constant 0 : i32
    %c0_i32_0 = arith.constant 0 : i32
    %c0_i32_1 = arith.constant 0 : i32
    return %c0_i32, %c0_i32_0 : i32, i32
  }
  func.func @transform_7(%arg0: i32) -> (i32, i32) {
    %c0_i32 = arith.constant 0 : i32
    %c0_i32_0 = arith.constant 0 : i32
    return %arg0, %c0_i32 : i32, i32
  }
}

</mosaic_0001>

<llo_original>
// kernel: tpu_custom_call.1
$region0: #{tpu_custom_call.1}
  #allocation0 [shape = 'u32[]', space=smem, size = 0x4, offset = 0x4, fixed_abs, tag = 'smem constant byte address 0x4 - core index']
  #allocation1 [shape = 'u32[144,128]{1,0:T(1,128)}', space=vmem, size = 0x12000, scoped, tag = 'internal scratch']
  #allocation2 [shape = 'f32[1,1]{1,0:T(1,128)S(6)}', space=smem, size = 0x200, scoped, tag = 'scoped memory for tpu_custom_call.1']
  %s0 = inlined_call_operand.hbm [shape: bf16[8,1600], index: 0, kind: input, shape index: {}]
  %s1 = inlined_call_operand.hbm [shape: bf16[1600,128], index: 1, kind: input, shape index: {}]
  %s2 = inlined_call_operand.vmem [shape: f32[1,128], index: 2, kind: input, shape index: {}]
  %s3 = inlined_call_operand.hbm [shape: bf16[128,128], index: 3, kind: input, shape index: {}]
  %s4 = inlined_call_operand.vmem [shape: f32[1,128], index: 4, kind: input, shape index: {}]
  %s5 = inlined_call_operand.vmem [shape: f32[1,128], index: 5, kind: input, shape index: {}]
  %s6 = inlined_call_operand.<no memory space> [shape: f32[1,1], index: 6, kind: input, shape index: {}]
  %s7 = inlined_call_operand.vmem [shape: f32[8,1], index: 7, kind: output, shape index: {}]
  %s8 = sld [smem:[#allocation0]]
  $region84: #{tpu_custom_call.1} parent=0
    _
  %s10 = ssub.s32 1, %s8
  %s11 = scalar_select 0, %s10, %s8
  %12 = sst [smem:[#allocation2]] %s6
  $region1: #{tpu_custom_call.1} parent=0
    #allocation3 [shape = 'u8[425984]{0}', space=vmem, size = 0x68000, scoped, tag = 'input window, operand 0, single buffered']
    #allocation4 [shape = 's32[1]{0}', space=sflag, size = 0x4, scoped, tag = 'scoped memory for tpu_custom_call.1']
    #allocation5 [shape = 'u8[409600]{0}', space=vmem, size = 0x64000, scoped, tag = 'input window, operand 1, single buffered']
    #allocation6 [shape = 's32[1]{0}', space=sflag, size = 0x4, scoped, tag = 'scoped memory for tpu_custom_call.1']
    #allocation7 [shape = 'u8[32768]{0}', space=vmem, size = 0x8000, scoped, tag = 'input window, operand 3, single buffered']
    #allocation8 [shape = 'u8[65536]{0}', space=vmem, size = 0x10000, scoped, tag = 'output window, operand 0, single buffered']
    %13 = vsyncpa [#allocation4], 0
    %14 = vsyncpa [#allocation6], 0
    // Predicated region
    $region2: #{tpu_custom_call.1} parent=1 // pred_check
      _
    $region3: #{tpu_custom_call.1} parent=1 // pred_check_branch
      %16 = sbr.rel (0) target = $region5
    $region4: #{tpu_custom_call.1} parent=1 // pred_region
      %s18 = ssub.s32 13312, 832
      %19 = vsyncadd [#allocation4], %s18
      %s20 = sshll.u32 [#allocation3], 4
      %s21 = int_to_ptr.vmem [resolvable:$true] %s20
      %26 = dma.hbm_to_vmem [thread:$0]  %s0, 832, %s21, [#allocation4], 832, 832, 52
    $region5: #{tpu_custom_call.1} parent=1 // pred_fallthru
      _
    // Predicated region
    $region6: #{tpu_custom_call.1} parent=1 // pred_check
      _
    $region7: #{tpu_custom_call.1} parent=1 // pred_check_branch
      %28 = sbr.rel (0) target = $region9
    $region8: #{tpu_custom_call.1} parent=1 // pred_region
      %s30 = ssub.s32 12800, 12800
      %31 = vsyncadd [#allocation6], %s30
      %s32 = sshll.u32 [#allocation5], 4
      %s33 = int_to_ptr.vmem [resolvable:$true] %s32
      %38 = dma.hbm_to_vmem [thread:$0]  %s1, 12800, %s33, [#allocation6], 64, 64, 4
    $region9: #{tpu_custom_call.1} parent=1 // pred_fallthru
      _
    // Predicated region
    $region10: #{tpu_custom_call.1} parent=1 // pred_check
      _
    $region11: #{tpu_custom_call.1} parent=1 // pred_check_branch
      %40 = sbr.rel (0) target = $region13
    $region12: #{tpu_custom_call.1} parent=1 // pred_region
      _
    $region13: #{tpu_custom_call.1} parent=1 // pred_fallthru
      _
    // Predicated region
    $region14: #{tpu_custom_call.1} parent=1 // pred_check
      _
    $region15: #{tpu_custom_call.1} parent=1 // pred_check_branch
      %42 = sbr.rel (0) target = $region17
    $region16: #{tpu_custom_call.1} parent=1 // pred_region
      %s44 = ssub.s32 1024, 1024
      %45 = vsyncadd [#allocation6], %s44
      %s46 = sshll.u32 [#allocation7], 4
      %s47 = int_to_ptr.vmem [resolvable:$true] %s46
      %52 = dma.hbm_to_vmem [thread:$0]  %s3, 1024, %s47, [#allocation6], 64, 64, 4
    $region17: #{tpu_custom_call.1} parent=1 // pred_fallthru
      _
    // Predicated region
    $region18: #{tpu_custom_call.1} parent=1 // pred_check
      _
    $region19: #{tpu_custom_call.1} parent=1 // pred_check_branch
      %54 = sbr.rel (0) target = $region21
    $region20: #{tpu_custom_call.1} parent=1 // pred_region
      _
    $region21: #{tpu_custom_call.1} parent=1 // pred_fallthru
      _
    // Predicated region
    $region22: #{tpu_custom_call.1} parent=1 // pred_check
      _
    $region23: #{tpu_custom_call.1} parent=1 // pred_check_branch
      %56 = sbr.rel (0) target = $region25
    $region24: #{tpu_custom_call.1} parent=1 // pred_region
      _
    $region25: #{tpu_custom_call.1} parent=1 // pred_fallthru
      _
    // Predicated region
    $region26: #{tpu_custom_call.1} parent=1 // pred_check
      _
    $region27: #{tpu_custom_call.1} parent=1 // pred_check_branch
      %58 = sbr.rel (0) target = $region29
    $region28: #{tpu_custom_call.1} parent=1 // pred_region
      _
    $region29: #{tpu_custom_call.1} parent=1 // pred_fallthru
      _
    // Predicated region
    $region30: #{tpu_custom_call.1} parent=1 // pred_check
      _
    $region31: #{tpu_custom_call.1} parent=1 // pred_check_branch
      %60 = sbr.rel (0) target = $region33
    $region32: #{tpu_custom_call.1} parent=1 // pred_region
      %61 = dma.done [#allocation4], 13312
    $region33: #{tpu_custom_call.1} parent=1 // pred_fallthru
      _
    // Predicated region
    $region34: #{tpu_custom_call.1} parent=1 // pred_check
      _
    $region35: #{tpu_custom_call.1} parent=1 // pred_check_branch
      %63 = sbr.rel (0) target = $region37
    $region36: #{tpu_custom_call.1} parent=1 // pred_region
      %64 = dma.done [#allocation6], 12800
    $region37: #{tpu_custom_call.1} parent=1 // pred_fallthru
      _
    // Predicated region
    $region38: #{tpu_custom_call.1} parent=1 // pred_check
      _
    $region39: #{tpu_custom_call.1} parent=1 // pred_check_branch
      %66 = sbr.rel (0) target = $region41
    $region40: #{tpu_custom_call.1} parent=1 // pred_region
      %67 = dma.done [#allocation6], 1024
    $region41: #{tpu_custom_call.1} parent=1 // pred_fallthru
      _
    %v69 = vld [vmem:[#allocation3] sm:$0xff]
    %v70 = vld [vmem:[#allocation3 + $0x8] sm:$0xff]
    %v71 = vld [vmem:[#allocation3 + $0x10] sm:$0xff]
    %v72 = vld [vmem:[#allocation3 + $0x18] sm:$0xff]
    %v73 = vld [vmem:[#allocation3 + $0x20] sm:$0xff]
    %v74 = vld [vmem:[#allocation3 + $0x28] sm:$0xff]
    %v75 = vld [vmem:[#allocation3 + $0x30] sm:$0xf]
    %v76 = vld [vmem:[#allocation3 + $0x34] sm:$0xff]
    %v77 = vld [vmem:[#allocation3 + $0x3c] sm:$0xff]
    %v78 = vld [vmem:[#allocation3 + $0x44] sm:$0xff]
    %v79 = vld [vmem:[#allocation3 + $0x4c] sm:$0xff]
    %v80 = vld [vmem:[#allocation3 + $0x54] sm:$0xff]
    %v81 = vld [vmem:[#allocation3 + $0x5c] sm:$0xff]
    %v82 = vld [vmem:[#allocation3 + $0x64] sm:$0xf]
    %v83 = vld [vmem:[#allocation3 + $0x68] sm:$0xff]
    %v84 = vld [vmem:[#allocation3 + $0x70] sm:$0xff]
    %v85 = vld [vmem:[#allocation3 + $0x78] sm:$0xff]
    %v86 = vld [vmem:[#allocation3 + $0x80] sm:$0xff]
    %v87 = vld [vmem:[#allocation3 + $0x88] sm:$0xff]
    %v88 = vld [vmem:[#allocation3 + $0x90] sm:$0xff]
    %v89 = vld [vmem:[#allocation3 + $0x98] sm:$0xf]
    %v90 = vld [vmem:[#allocation3 + $0x9c] sm:$0xff]
    %v91 = vld [vmem:[#allocation3 + $0xa4] sm:$0xff]
    %v92 = vld [vmem:[#allocation3 + $0xac] sm:$0xff]
    %v93 = vld [vmem:[#allocation3 + $0xb4] sm:$0xff]
    %v94 = vld [vmem:[#allocation3 + $0xbc] sm:$0xff]
    %v95 = vld [vmem:[#allocation3 + $0xc4] sm:$0xff]
    %v96 = vld [vmem:[#allocation3 + $0xcc] sm:$0xf]
    %v97 = vld [vmem:[#allocation3 + $0xd0] sm:$0xff]
    %v98 = vld [vmem:[#allocation3 + $0xd8] sm:$0xff]
    %v99 = vld [vmem:[#allocation3 + $0xe0] sm:$0xff]
    %v100 = vld [vmem:[#allocation3 + $0xe8] sm:$0xff]
    %v101 = vld [vmem:[#allocation3 + $0xf0] sm:$0xff]
    %v102 = vld [vmem:[#allocation3 + $0xf8] sm:$0xff]
    %v103 = vld [vmem:[#allocation3 + $0x100] sm:$0xf]
    %v104 = vld [vmem:[#allocation3 + $0x104] sm:$0xff]
    %v105 = vld [vmem:[#allocation3 + $0x10c] sm:$0xff]
    %v106 = vld [vmem:[#allocation3 + $0x114] sm:$0xff]
    %v107 = vld [vmem:[#allocation3 + $0x11c] sm:$0xff]
    %v108 = vld [vmem:[#allocation3 + $0x124] sm:$0xff]
    %v109 = vld [vmem:[#allocation3 + $0x12c] sm:$0xff]
    %v110 = vld [vmem:[#allocation3 + $0x134] sm:$0xf]
    %v111 = vld [vmem:[#allocation3 + $0x138] sm:$0xff]
    %v112 = vld [vmem:[#allocation3 + $0x140] sm:$0xff]
    %v113 = vld [vmem:[#allocation3 + $0x148] sm:$0xff]
    %v114 = vld [vmem:[#allocation3 + $0x150] sm:$0xff]
    %v115 = vld [vmem:[#allocation3 + $0x158] sm:$0xff]
    %v116 = vld [vmem:[#allocation3 + $0x160] sm:$0xff]
    %v117 = vld [vmem:[#allocation3 + $0x168] sm:$0xf]
    %v118 = vld [vmem:[#allocation3 + $0x16c] sm:$0xff]
    %v119 = vld [vmem:[#allocation3 + $0x174] sm:$0xff]
    %v120 = vld [vmem:[#allocation3 + $0x17c] sm:$0xff]
    %v121 = vld [vmem:[#allocation3 + $0x184] sm:$0xff]
    %v122 = vld [vmem:[#allocation3 + $0x18c] sm:$0xff]
    %v123 = vld [vmem:[#allocation3 + $0x194] sm:$0xff]
    %v124 = vld [vmem:[#allocation3 + $0x19c] sm:$0xf]
    %v125 = vld [vmem:[#allocation3 + $0x1a0] sm:$0xff]
    %v126 = vld [vmem:[#allocation3 + $0x1a8] sm:$0xff]
    %v127 = vld [vmem:[#allocation3 + $0x1b0] sm:$0xff]
    %v128 = vld [vmem:[#allocation3 + $0x1b8] sm:$0xff]
    %v129 = vld [vmem:[#allocation3 + $0x1c0] sm:$0xff]
    %v130 = vld [vmem:[#allocation3 + $0x1c8] sm:$0xff]
    %v131 = vld [vmem:[#allocation3 + $0x1d0] sm:$0xf]
    %v132 = vld [vmem:[#allocation3 + $0x1d4] sm:$0xff]
    %v133 = vld [vmem:[#allocation3 + $0x1dc] sm:$0xff]
    %v134 = vld [vmem:[#allocation3 + $0x1e4] sm:$0xff]
    %v135 = vld [vmem:[#allocation3 + $0x1ec] sm:$0xff]
    %v136 = vld [vmem:[#allocation3 + $0x1f4] sm:$0xff]
    %v137 = vld [vmem:[#allocation3 + $0x1fc] sm:$0xff]
    %v138 = vld [vmem:[#allocation3 + $0x204] sm:$0xf]
    %v139 = vld [vmem:[#allocation3 + $0x208] sm:$0xff]
    %v140 = vld [vmem:[#allocation3 + $0x210] sm:$0xff]
    %v141 = vld [vmem:[#allocation3 + $0x218] sm:$0xff]
    %v142 = vld [vmem:[#allocation3 + $0x220] sm:$0xff]
    %v143 = vld [vmem:[#allocation3 + $0x228] sm:$0xff]
    %v144 = vld [vmem:[#allocation3 + $0x230] sm:$0xff]
    %v145 = vld [vmem:[#allocation3 + $0x238] sm:$0xf]
    %v146 = vld [vmem:[#allocation3 + $0x23c] sm:$0xff]
    %v147 = vld [vmem:[#allocation3 + $0x244] sm:$0xff]
    %v148 = vld [vmem:[#allocation3 + $0x24c] sm:$0xff]
    %v149 = vld [vmem:[#allocation3 + $0x254] sm:$0xff]
    %v150 = vld [vmem:[#allocation3 + $0x25c] sm:$0xff]
    %v151 = vld [vmem:[#allocation3 + $0x264] sm:$0xff]
    %v152 = vld [vmem:[#allocation3 + $0x26c] sm:$0xf]
    %v153 = vld [vmem:[#allocation3 + $0x270] sm:$0xff]
    %v154 = vld [vmem:[#allocation3 + $0x278] sm:$0xff]
    %v155 = vld [vmem:[#allocation3 + $0x280] sm:$0xff]
    %v156 = vld [vmem:[#allocation3 + $0x288] sm:$0xff]
    %v157 = vld [vmem:[#allocation3 + $0x290] sm:$0xff]
    %v158 = vld [vmem:[#allocation3 + $0x298] sm:$0xff]
    %v159 = vld [vmem:[#allocation3 + $0x2a0] sm:$0xf]
    %v160 = vld [vmem:[#allocation3 + $0x2a4] sm:$0xff]
    %v161 = vld [vmem:[#allocation3 + $0x2ac] sm:$0xff]
    %v162 = vld [vmem:[#allocation3 + $0x2b4] sm:$0xff]
    %v163 = vld [vmem:[#allocation3 + $0x2bc] sm:$0xff]
    %v164 = vld [vmem:[#allocation3 + $0x2c4] sm:$0xff]
    %v165 = vld [vmem:[#allocation3 + $0x2cc] sm:$0xff]
    %v166 = vld [vmem:[#allocation3 + $0x2d4] sm:$0xf]
    %v167 = vld [vmem:[#allocation3 + $0x2d8] sm:$0xff]
    %v168 = vld [vmem:[#allocation3 + $0x2e0] sm:$0xff]
    %v169 = vld [vmem:[#allocation3 + $0x2e8] sm:$0xff]
    %v170 = vld [vmem:[#allocation3 + $0x2f0] sm:$0xff]
    %v171 = vld [vmem:[#allocation3 + $0x2f8] sm:$0xff]
    %v172 = vld [vmem:[#allocation3 + $0x300] sm:$0xff]
    %v173 = vld [vmem:[#allocation3 + $0x308] sm:$0xf]
    %v174 = vld [vmem:[#allocation3 + $0x30c] sm:$0xff]
    %v175 = vld [vmem:[#allocation3 + $0x314] sm:$0xff]
    %v176 = vld [vmem:[#allocation3 + $0x31c] sm:$0xff]
    %v177 = vld [vmem:[#allocation3 + $0x324] sm:$0xff]
    %v178 = vld [vmem:[#allocation3 + $0x32c] sm:$0xff]
    %v179 = vld [vmem:[#allocation3 + $0x334] sm:$0xff]
    %v180 = vld [vmem:[#allocation3 + $0x33c] sm:$0xf]
    %v181 = vld [vmem:[#allocation5] sm:$0xf]
    %v182 = vld [vmem:[#allocation5 + $0x4] sm:$0xf]
    %v183 = vld [vmem:[#allocation5 + $0x8] sm:$0xf]
    %v184 = vld [vmem:[#allocation5 + $0xc] sm:$0xf]
    %v185 = vld [vmem:[#allocation5 + $0x10] sm:$0xf]
    %v186 = vld [vmem:[#allocation5 + $0x14] sm:$0xf]
    %v187 = vld [vmem:[#allocation5 + $0x18] sm:$0xf]
    %v188 = vld [vmem:[#allocation5 + $0x1c] sm:$0xf]
    %v189 = vld [vmem:[#allocation5 + $0x20] sm:$0xf]
    %v190 = vld [vmem:[#allocation5 + $0x24] sm:$0xf]
    %v191 = vld [vmem:[#allocation5 + $0x28] sm:$0xf]
    %v192 = vld [vmem:[#allocation5 + $0x2c] sm:$0xf]
    %v193 = vld [vmem:[#allocation5 + $0x30] sm:$0xf]
    %v194 = vld [vmem:[#allocation5 + $0x34] sm:$0xf]
    %v195 = vld [vmem:[#allocation5 + $0x38] sm:$0xf]
    %v196 = vld [vmem:[#allocation5 + $0x3c] sm:$0xf]
    %v197 = vld [vmem:[#allocation5 + $0x40] sm:$0xf]
    %v198 = vld [vmem:[#allocation5 + $0x44] sm:$0xf]
    %v199 = vld [vmem:[#allocation5 + $0x48] sm:$0xf]
    %v200 = vld [vmem:[#allocation5 + $0x4c] sm:$0xf]
    %v201 = vld [vmem:[#allocation5 + $0x50] sm:$0xf]
    %v202 = vld [vmem:[#allocation5 + $0x54] sm:$0xf]
    %v203 = vld [vmem:[#allocation5 + $0x58] sm:$0xf]
    %v204 = vld [vmem:[#allocation5 + $0x5c] sm:$0xf]
    %v205 = vld [vmem:[#allocation5 + $0x60] sm:$0xf]
    %v206 = vld [vmem:[#allocation5 + $0x64] sm:$0xf]
    %v207 = vld [vmem:[#allocation5 + $0x68] sm:$0xf]
    %v208 = vld [vmem:[#allocation5 + $0x6c] sm:$0xf]
    %v209 = vld [vmem:[#allocation5 + $0x70] sm:$0xf]
    %v210 = vld [vmem:[#allocation5 + $0x74] sm:$0xf]
    %v211 = vld [vmem:[#allocation5 + $0x78] sm:$0xf]
    %v212 = vld [vmem:[#allocation5 + $0x7c] sm:$0xf]
    %v213 = vld [vmem:[#allocation5 + $0x80] sm:$0xf]
    %v214 = vld [vmem:[#allocation5 + $0x84] sm:$0xf]
    %v215 = vld [vmem:[#allocation5 + $0x88] sm:$0xf]
    %v216 = vld [vmem:[#allocation5 + $0x8c] sm:$0xf]
    %v217 = vld [vmem:[#allocation5 + $0x90] sm:$0xf]
    %v218 = vld [vmem:[#allocation5 + $0x94] sm:$0xf]
    %v219 = vld [vmem:[#allocation5 + $0x98] sm:$0xf]
    %v220 = vld [vmem:[#allocation5 + $0x9c] sm:$0xf]
    %v221 = vld [vmem:[#allocation5 + $0xa0] sm:$0xf]
    %v222 = vld [vmem:[#allocation5 + $0xa4] sm:$0xf]
    %v223 = vld [vmem:[#allocation5 + $0xa8] sm:$0xf]
    %v224 = vld [vmem:[#allocation5 + $0xac] sm:$0xf]
    %v225 = vld [vmem:[#allocation5 + $0xb0] sm:$0xf]
    %v226 = vld [vmem:[#allocation5 + $0xb4] sm:$0xf]
    %v227 = vld [vmem:[#allocation5 + $0xb8] sm:$0xf]
    %v228 = vld [vmem:[#allocation5 + $0xbc] sm:$0xf]
    %v229 = vld [vmem:[#allocation5 + $0xc0] sm:$0xf]
    %v230 = vld [vmem:[#allocation5 + $0xc4] sm:$0xf]
    %v231 = vld [vmem:[#allocation5 + $0xc8] sm:$0xf]
    %v232 = vld [vmem:[#allocation5 + $0xcc] sm:$0xf]
    %v233 = vld [vmem:[#allocation5 + $0xd0] sm:$0xf]
    %v234 = vld [vmem:[#allocation5 + $0xd4] sm:$0xf]
    %v235 = vld [vmem:[#allocation5 + $0xd8] sm:$0xf]
    %v236 = vld [vmem:[#allocation5 + $0xdc] sm:$0xf]
    %v237 = vld [vmem:[#allocation5 + $0xe0] sm:$0xf]
    %v238 = vld [vmem:[#allocation5 + $0xe4] sm:$0xf]
    %v239 = vld [vmem:[#allocation5 + $0xe8] sm:$0xf]
    %v240 = vld [vmem:[#allocation5 + $0xec] sm:$0xf]
    %v241 = vld [vmem:[#allocation5 + $0xf0] sm:$0xf]
    %v242 = vld [vmem:[#allocation5 + $0xf4] sm:$0xf]
    %v243 = vld [vmem:[#allocation5 + $0xf8] sm:$0xf]
    %v244 = vld [vmem:[#allocation5 + $0xfc] sm:$0xf]
    %v245 = vld [vmem:[#allocation5 + $0x100] sm:$0xf]
    %v246 = vld [vmem:[#allocation5 + $0x104] sm:$0xf]
    %v247 = vld [vmem:[#allocation5 + $0x108] sm:$0xf]
    %v248 = vld [vmem:[#allocation5 + $0x10c] sm:$0xf]
    %v249 = vld [vmem:[#allocation5 + $0x110] sm:$0xf]
    %v250 = vld [vmem:[#allocation5 + $0x114] sm:$0xf]
    %v251 = vld [vmem:[#allocation5 + $0x118] sm:$0xf]
    %v252 = vld [vmem:[#allocation5 + $0x11c] sm:$0xf]
    %v253 = vld [vmem:[#allocation5 + $0x120] sm:$0xf]
    %v254 = vld [vmem:[#allocation5 + $0x124] sm:$0xf]
    %v255 = vld [vmem:[#allocation5 + $0x128] sm:$0xf]
    %v256 = vld [vmem:[#allocation5 + $0x12c] sm:$0xf]
    %v257 = vld [vmem:[#allocation5 + $0x130] sm:$0xf]
    %v258 = vld [vmem:[#allocation5 + $0x134] sm:$0xf]
    %v259 = vld [vmem:[#allocation5 + $0x138] sm:$0xf]
    %v260 = vld [vmem:[#allocation5 + $0x13c] sm:$0xf]
    %v261 = vld [vmem:[#allocation5 + $0x140] sm:$0xf]
    %v262 = vld [vmem:[#allocation5 + $0x144] sm:$0xf]
    %v263 = vld [vmem:[#allocation5 + $0x148] sm:$0xf]
    %v264 = vld [vmem:[#allocation5 + $0x14c] sm:$0xf]
    %v265 = vld [vmem:[#allocation5 + $0x150] sm:$0xf]
    %v266 = vld [vmem:[#allocation5 + $0x154] sm:$0xf]
    %v267 = vld [vmem:[#allocation5 + $0x158] sm:$0xf]
    %v268 = vld [vmem:[#allocation5 + $0x15c] sm:$0xf]
    %v269 = vld [vmem:[#allocation5 + $0x160] sm:$0xf]
    %v270 = vld [vmem:[#allocation5 + $0x164] sm:$0xf]
    %v271 = vld [vmem:[#allocation5 + $0x168] sm:$0xf]
    %v272 = vld [vmem:[#allocation5 + $0x16c] sm:$0xf]
    %v273 = vld [vmem:[#allocation5 + $0x170] sm:$0xf]
    %v274 = vld [vmem:[#allocation5 + $0x174] sm:$0xf]
    %v275 = vld [vmem:[#allocation5 + $0x178] sm:$0xf]
    %v276 = vld [vmem:[#allocation5 + $0x17c] sm:$0xf]
    %v277 = vld [vmem:[#allocation5 + $0x180] sm:$0xf]
    %v278 = vld [vmem:[#allocation5 + $0x184] sm:$0xf]
    %v279 = vld [vmem:[#allocation5 + $0x188] sm:$0xf]
    %v280 = vld [vmem:[#allocation5 + $0x18c] sm:$0xf]
    %v281 = vld [vmem:[#allocation5 + $0x190] sm:$0xf]
    %v282 = vld [vmem:[#allocation5 + $0x194] sm:$0xf]
    %v283 = vld [vmem:[#allocation5 + $0x198] sm:$0xf]
    %v284 = vld [vmem:[#allocation5 + $0x19c] sm:$0xf]
    %v285 = vld [vmem:[#allocation5 + $0x1a0] sm:$0xf]
    %v286 = vld [vmem:[#allocation5 + $0x1a4] sm:$0xf]
    %v287 = vld [vmem:[#allocation5 + $0x1a8] sm:$0xf]
    %v288 = vld [vmem:[#allocation5 + $0x1ac] sm:$0xf]
    %v289 = vld [vmem:[#allocation5 + $0x1b0] sm:$0xf]
    %v290 = vld [vmem:[#allocation5 + $0x1b4] sm:$0xf]
    %v291 = vld [vmem:[#allocation5 + $0x1b8] sm:$0xf]
    %v292 = vld [vmem:[#allocation5 + $0x1bc] sm:$0xf]
    %v293 = vld [vmem:[#allocation5 + $0x1c0] sm:$0xf]
    %v294 = vld [vmem:[#allocation5 + $0x1c4] sm:$0xf]
    %v295 = vld [vmem:[#allocation5 + $0x1c8] sm:$0xf]
    %v296 = vld [vmem:[#allocation5 + $0x1cc] sm:$0xf]
    %v297 = vld [vmem:[#allocation5 + $0x1d0] sm:$0xf]
    %v298 = vld [vmem:[#allocation5 + $0x1d4] sm:$0xf]
    %v299 = vld [vmem:[#allocation5 + $0x1d8] sm:$0xf]
    %v300 = vld [vmem:[#allocation5 + $0x1dc] sm:$0xf]
    %v301 = vld [vmem:[#allocation5 + $0x1e0] sm:$0xf]
    %v302 = vld [vmem:[#allocation5 + $0x1e4] sm:$0xf]
    %v303 = vld [vmem:[#allocation5 + $0x1e8] sm:$0xf]
    %v304 = vld [vmem:[#allocation5 + $0x1ec] sm:$0xf]
    %v305 = vld [vmem:[#allocation5 + $0x1f0] sm:$0xf]
    %v306 = vld [vmem:[#allocation5 + $0x1f4] sm:$0xf]
    %v307 = vld [vmem:[#allocation5 + $0x1f8] sm:$0xf]
    %v308 = vld [vmem:[#allocation5 + $0x1fc] sm:$0xf]
    %v309 = vld [vmem:[#allocation5 + $0x200] sm:$0xf]
    %v310 = vld [vmem:[#allocation5 + $0x204] sm:$0xf]
    %v311 = vld [vmem:[#allocation5 + $0x208] sm:$0xf]
    %v312 = vld [vmem:[#allocation5 + $0x20c] sm:$0xf]
    %v313 = vld [vmem:[#allocation5 + $0x210] sm:$0xf]
    %v314 = vld [vmem:[#allocation5 + $0x214] sm:$0xf]
    %v315 = vld [vmem:[#allocation5 + $0x218] sm:$0xf]
    %v316 = vld [vmem:[#allocation5 + $0x21c] sm:$0xf]
    %v317 = vld [vmem:[#allocation5 + $0x220] sm:$0xf]
    %v318 = vld [vmem:[#allocation5 + $0x224] sm:$0xf]
    %v319 = vld [vmem:[#allocation5 + $0x228] sm:$0xf]
    %v320 = vld [vmem:[#allocation5 + $0x22c] sm:$0xf]
    %v321 = vld [vmem:[#allocation5 + $0x230] sm:$0xf]
    %v322 = vld [vmem:[#allocation5 + $0x234] sm:$0xf]
    %v323 = vld [vmem:[#allocation5 + $0x238] sm:$0xf]
    %v324 = vld [vmem:[#allocation5 + $0x23c] sm:$0xf]
    %v325 = vld [vmem:[#allocation5 + $0x240] sm:$0xf]
    %v326 = vld [vmem:[#allocation5 + $0x244] sm:$0xf]
    %v327 = vld [vmem:[#allocation5 + $0x248] sm:$0xf]
    %v328 = vld [vmem:[#allocation5 + $0x24c] sm:$0xf]
    %v329 = vld [vmem:[#allocation5 + $0x250] sm:$0xf]
    %v330 = vld [vmem:[#allocation5 + $0x254] sm:$0xf]
    %v331 = vld [vmem:[#allocation5 + $0x258] sm:$0xf]
    %v332 = vld [vmem:[#allocation5 + $0x25c] sm:$0xf]
    %v333 = vld [vmem:[#allocation5 + $0x260] sm:$0xf]
    %v334 = vld [vmem:[#allocation5 + $0x264] sm:$0xf]
    %v335 = vld [vmem:[#allocation5 + $0x268] sm:$0xf]
    %v336 = vld [vmem:[#allocation5 + $0x26c] sm:$0xf]
    %v337 = vld [vmem:[#allocation5 + $0x270] sm:$0xf]
    %v338 = vld [vmem:[#allocation5 + $0x274] sm:$0xf]
    %v339 = vld [vmem:[#allocation5 + $0x278] sm:$0xf]
    %v340 = vld [vmem:[#allocation5 + $0x27c] sm:$0xf]
    %v341 = vld [vmem:[#allocation5 + $0x280] sm:$0xf]
    %v342 = vld [vmem:[#allocation5 + $0x284] sm:$0xf]
    %v343 = vld [vmem:[#allocation5 + $0x288] sm:$0xf]
    %v344 = vld [vmem:[#allocation5 + $0x28c] sm:$0xf]
    %v345 = vld [vmem:[#allocation5 + $0x290] sm:$0xf]
    %v346 = vld [vmem:[#allocation5 + $0x294] sm:$0xf]
    %v347 = vld [vmem:[#allocation5 + $0x298] sm:$0xf]
    %v348 = vld [vmem:[#allocation5 + $0x29c] sm:$0xf]
    %v349 = vld [vmem:[#allocation5 + $0x2a0] sm:$0xf]
    %v350 = vld [vmem:[#allocation5 + $0x2a4] sm:$0xf]
    %v351 = vld [vmem:[#allocation5 + $0x2a8] sm:$0xf]
    %v352 = vld [vmem:[#allocation5 + $0x2ac] sm:$0xf]
    %v353 = vld [vmem:[#allocation5 + $0x2b0] sm:$0xf]
    %v354 = vld [vmem:[#allocation5 + $0x2b4] sm:$0xf]
    %v355 = vld [vmem:[#allocation5 + $0x2b8] sm:$0xf]
    %v356 = vld [vmem:[#allocation5 + $0x2bc] sm:$0xf]
    %v357 = vld [vmem:[#allocation5 + $0x2c0] sm:$0xf]
    %v358 = vld [vmem:[#allocation5 + $0x2c4] sm:$0xf]
    %v359 = vld [vmem:[#allocation5 + $0x2c8] sm:$0xf]
    %v360 = vld [vmem:[#allocation5 + $0x2cc] sm:$0xf]
    %v361 = vld [vmem:[#allocation5 + $0x2d0] sm:$0xf]
    %v362 = vld [vmem:[#allocation5 + $0x2d4] sm:$0xf]
    %v363 = vld [vmem:[#allocation5 + $0x2d8] sm:$0xf]
    %v364 = vld [vmem:[#allocation5 + $0x2dc] sm:$0xf]
    %v365 = vld [vmem:[#allocation5 + $0x2e0] sm:$0xf]
    %v366 = vld [vmem:[#allocation5 + $0x2e4] sm:$0xf]
    %v367 = vld [vmem:[#allocation5 + $0x2e8] sm:$0xf]
    %v368 = vld [vmem:[#allocation5 + $0x2ec] sm:$0xf]
    %v369 = vld [vmem:[#allocation5 + $0x2f0] sm:$0xf]
    %v370 = vld [vmem:[#allocation5 + $0x2f4] sm:$0xf]
    %v371 = vld [vmem:[#allocation5 + $0x2f8] sm:$0xf]
    %v372 = vld [vmem:[#allocation5 + $0x2fc] sm:$0xf]
    %v373 = vld [vmem:[#allocation5 + $0x300] sm:$0xf]
    %v374 = vld [vmem:[#allocation5 + $0x304] sm:$0xf]
    %v375 = vld [vmem:[#allocation5 + $0x308] sm:$0xf]
    %v376 = vld [vmem:[#allocation5 + $0x30c] sm:$0xf]
    %v377 = vld [vmem:[#allocation5 + $0x310] sm:$0xf]
    %v378 = vld [vmem:[#allocation5 + $0x314] sm:$0xf]
    %v379 = vld [vmem:[#allocation5 + $0x318] sm:$0xf]
    %v380 = vld [vmem:[#allocation5 + $0x31c] sm:$0xf]
    %v381 = vld [vmem:[%s2] sm:$0x1]
    %v383 = vlaneseq
    %v384 = vshrl.u32 %v383, 7
    %v385 = vsub.s32 0, %v384
    %v386 = vrot.slane %v381, %v385
    %v500 = vunpack.c.l.b16 %v69
    %v501 = vunpack.c.h.b16 %v69
    %v502 = vunpack.c.l.b16 %v70
    %v503 = vunpack.c.h.b16 %v70
    %v504 = vunpack.c.l.b16 %v71
    %v505 = vunpack.c.h.b16 %v71
    %v506 = vunpack.c.l.b16 %v72
    %v507 = vunpack.c.h.b16 %v72
    %v508 = vunpack.c.l.b16 %v73
    %v509 = vunpack.c.h.b16 %v73
    %v510 = vunpack.c.l.b16 %v74
    %v511 = vunpack.c.h.b16 %v74
    %v512 = vunpack.c.l.b16 %v75
    %v513 = vunpack.c.l.b16 %v76
    %v514 = vunpack.c.h.b16 %v76
    %v515 = vunpack.c.l.b16 %v77
    %v516 = vunpack.c.h.b16 %v77
    %v517 = vunpack.c.l.b16 %v78
    %v518 = vunpack.c.h.b16 %v78
    %v519 = vunpack.c.l.b16 %v79
    %v520 = vunpack.c.h.b16 %v79
    %v521 = vunpack.c.l.b16 %v80
    %v522 = vunpack.c.h.b16 %v80
    %v523 = vunpack.c.l.b16 %v81
    %v524 = vunpack.c.h.b16 %v81
    %v525 = vunpack.c.l.b16 %v82
    %v526 = vunpack.c.l.b16 %v83
    %v527 = vunpack.c.h.b16 %v83
    %v528 = vunpack.c.l.b16 %v84
    %v529 = vunpack.c.h.b16 %v84
    %v530 = vunpack.c.l.b16 %v85
    %v531 = vunpack.c.h.b16 %v85
    %v532 = vunpack.c.l.b16 %v86
    %v533 = vunpack.c.h.b16 %v86
    %v534 = vunpack.c.l.b16 %v87
    %v535 = vunpack.c.h.b16 %v87
    %v536 = vunpack.c.l.b16 %v88
    %v537 = vunpack.c.h.b16 %v88
    %v538 = vunpack.c.l.b16 %v89
    %v539 = vunpack.c.l.b16 %v90
    %v540 = vunpack.c.h.b16 %v90
    %v541 = vunpack.c.l.b16 %v91
    %v542 = vunpack.c.h.b16 %v91
    %v543 = vunpack.c.l.b16 %v92
    %v544 = vunpack.c.h.b16 %v92
    %v545 = vunpack.c.l.b16 %v93
    %v546 = vunpack.c.h.b16 %v93
    %v547 = vunpack.c.l.b16 %v94
    %v548 = vunpack.c.h.b16 %v94
    %v549 = vunpack.c.l.b16 %v95
    %v550 = vunpack.c.h.b16 %v95
    %v551 = vunpack.c.l.b16 %v96
    %v552 = vunpack.c.l.b16 %v97
    %v553 = vunpack.c.h.b16 %v97
    %v554 = vunpack.c.l.b16 %v98
    %v555 = vunpack.c.h.b16 %v98
    %v556 = vunpack.c.l.b16 %v99
    %v557 = vunpack.c.h.b16 %v99
    %v558 = vunpack.c.l.b16 %v100
    %v559 = vunpack.c.h.b16 %v100
    %v560 = vunpack.c.l.b16 %v101
    %v561 = vunpack.c.h.b16 %v101
    %v562 = vunpack.c.l.b16 %v102
    %v563 = vunpack.c.h.b16 %v102
    %v564 = vunpack.c.l.b16 %v103
    %v565 = vunpack.c.l.b16 %v104
    %v566 = vunpack.c.h.b16 %v104
    %v567 = vunpack.c.l.b16 %v105
    %v568 = vunpack.c.h.b16 %v105
    %v569 = vunpack.c.l.b16 %v106
    %v570 = vunpack.c.h.b16 %v106
    %v571 = vunpack.c.l.b16 %v107
    %v572 = vunpack.c.h.b16 %v107
    %v573 = vunpack.c.l.b16 %v108
    %v574 = vunpack.c.h.b16 %v108
    %v575 = vunpack.c.l.b16 %v109
    %v576 = vunpack.c.h.b16 %v109
    %v577 = vunpack.c.l.b16 %v110
    %v578 = vunpack.c.l.b16 %v111
    %v579 = vunpack.c.h.b16 %v111
    %v580 = vunpack.c.l.b16 %v112
    %v581 = vunpack.c.h.b16 %v112
    %v582 = vunpack.c.l.b16 %v113
    %v583 = vunpack.c.h.b16 %v113
    %v584 = vunpack.c.l.b16 %v114
    %v585 = vunpack.c.h.b16 %v114
    %v586 = vunpack.c.l.b16 %v115
    %v587 = vunpack.c.h.b16 %v115
    %v588 = vunpack.c.l.b16 %v116
    %v589 = vunpack.c.h.b16 %v116
    %v590 = vunpack.c.l.b16 %v117
    %v591 = vunpack.c.l.b16 %v118
    %v592 = vunpack.c.h.b16 %v118
    %v593 = vunpack.c.l.b16 %v119
    %v594 = vunpack.c.h.b16 %v119
    %v595 = vunpack.c.l.b16 %v120
    %v596 = vunpack.c.h.b16 %v120
    %v597 = vunpack.c.l.b16 %v121
    %v598 = vunpack.c.h.b16 %v121
    %v599 = vunpack.c.l.b16 %v122
    %v600 = vunpack.c.h.b16 %v122
    %v601 = vunpack.c.l.b16 %v123
    %v602 = vunpack.c.h.b16 %v123
    %v603 = vunpack.c.l.b16 %v124
    %v604 = vunpack.c.l.b16 %v125
    %v605 = vunpack.c.h.b16 %v125
    %v606 = vunpack.c.l.b16 %v126
    %v607 = vunpack.c.h.b16 %v126
    %v608 = vunpack.c.l.b16 %v127
    %v609 = vunpack.c.h.b16 %v127
    %v610 = vunpack.c.l.b16 %v128
    %v611 = vunpack.c.h.b16 %v128
    %v612 = vunpack.c.l.b16 %v129
    %v613 = vunpack.c.h.b16 %v129
    %v614 = vunpack.c.l.b16 %v130
    %v615 = vunpack.c.h.b16 %v130
    %v616 = vunpack.c.l.b16 %v131
    %v617 = vunpack.c.l.b16 %v132
    %v618 = vunpack.c.h.b16 %v132
    %v619 = vunpack.c.l.b16 %v133
    %v620 = vunpack.c.h.b16 %v133
    %v621 = vunpack.c.l.b16 %v134
    %v622 = vunpack.c.h.b16 %v134
    %v623 = vunpack.c.l.b16 %v135
    %v624 = vunpack.c.h.b16 %v135
    %v625 = vunpack.c.l.b16 %v136
    %v626 = vunpack.c.h.b16 %v136
    %v627 = vunpack.c.l.b16 %v137
    %v628 = vunpack.c.h.b16 %v137
    %v629 = vunpack.c.l.b16 %v138
    %v630 = vunpack.c.l.b16 %v139
    %v631 = vunpack.c.h.b16 %v139
    %v632 = vunpack.c.l.b16 %v140
    %v633 = vunpack.c.h.b16 %v140
    %v634 = vunpack.c.l.b16 %v141
    %v635 = vunpack.c.h.b16 %v141
    %v636 = vunpack.c.l.b16 %v142
    %v637 = vunpack.c.h.b16 %v142
    %v638 = vunpack.c.l.b16 %v143
    %v639 = vunpack.c.h.b16 %v143
    %v640 = vunpack.c.l.b16 %v144
    %v641 = vunpack.c.h.b16 %v144
    %v642 = vunpack.c.l.b16 %v145
    %v643 = vunpack.c.l.b16 %v146
    %v644 = vunpack.c.h.b16 %v146
    %v645 = vunpack.c.l.b16 %v147
    %v646 = vunpack.c.h.b16 %v147
    %v647 = vunpack.c.l.b16 %v148
    %v648 = vunpack.c.h.b16 %v148
    %v649 = vunpack.c.l.b16 %v149
    %v650 = vunpack.c.h.b16 %v149
    %v651 = vunpack.c.l.b16 %v150
    %v652 = vunpack.c.h.b16 %v150
    %v653 = vunpack.c.l.b16 %v151
    %v654 = vunpack.c.h.b16 %v151
    %v655 = vunpack.c.l.b16 %v152
    %v656 = vunpack.c.l.b16 %v153
    %v657 = vunpack.c.h.b16 %v153
    %v658 = vunpack.c.l.b16 %v154
    %v659 = vunpack.c.h.b16 %v154
    %v660 = vunpack.c.l.b16 %v155
    %v661 = vunpack.c.h.b16 %v155
    %v662 = vunpack.c.l.b16 %v156
    %v663 = vunpack.c.h.b16 %v156
    %v664 = vunpack.c.l.b16 %v157
    %v665 = vunpack.c.h.b16 %v157
    %v666 = vunpack.c.l.b16 %v158
    %v667 = vunpack.c.h.b16 %v158
    %v668 = vunpack.c.l.b16 %v159
    %v669 = vunpack.c.l.b16 %v160
    %v670 = vunpack.c.h.b16 %v160
    %v671 = vunpack.c.l.b16 %v161
    %v672 = vunpack.c.h.b16 %v161
    %v673 = vunpack.c.l.b16 %v162
    %v674 = vunpack.c.h.b16 %v162
    %v675 = vunpack.c.l.b16 %v163
    %v676 = vunpack.c.h.b16 %v163
    %v677 = vunpack.c.l.b16 %v164
    %v678 = vunpack.c.h.b16 %v164
    %v679 = vunpack.c.l.b16 %v165
    %v680 = vunpack.c.h.b16 %v165
    %v681 = vunpack.c.l.b16 %v166
    %v682 = vunpack.c.l.b16 %v167
    %v683 = vunpack.c.h.b16 %v167
    %v684 = vunpack.c.l.b16 %v168
    %v685 = vunpack.c.h.b16 %v168
    %v686 = vunpack.c.l.b16 %v169
    %v687 = vunpack.c.h.b16 %v169
    %v688 = vunpack.c.l.b16 %v170
    %v689 = vunpack.c.h.b16 %v170
    %v690 = vunpack.c.l.b16 %v171
    %v691 = vunpack.c.h.b16 %v171
    %v692 = vunpack.c.l.b16 %v172
    %v693 = vunpack.c.h.b16 %v172
    %v694 = vunpack.c.l.b16 %v173
    %v695 = vunpack.c.l.b16 %v174
    %v696 = vunpack.c.h.b16 %v174
    %v697 = vunpack.c.l.b16 %v175
    %v698 = vunpack.c.h.b16 %v175
    %v699 = vunpack.c.l.b16 %v176
    %v700 = vunpack.c.h.b16 %v176
    %v701 = vunpack.c.l.b16 %v177
    %v702 = vunpack.c.h.b16 %v177
    %v703 = vunpack.c.l.b16 %v178
    %v704 = vunpack.c.h.b16 %v178
    %v705 = vunpack.c.l.b16 %v179
    %v706 = vunpack.c.h.b16 %v179
    %v707 = vunpack.c.l.b16 %v180
    %v708 = vpack.c.b16 %v513, %v500
    %v709 = vpack.c.b16 %v514, %v501
    %v710 = vpack.c.b16 %v515, %v502
    %v711 = vpack.c.b16 %v516, %v503
    %v712 = vpack.c.b16 %v517, %v504
    %v713 = vpack.c.b16 %v518, %v505
    %v714 = vpack.c.b16 %v519, %v506
    %v715 = vpack.c.b16 %v520, %v507
    %v716 = vpack.c.b16 %v521, %v508
    %v717 = vpack.c.b16 %v522, %v509
    %v718 = vpack.c.b16 %v523, %v510
    %v719 = vpack.c.b16 %v524, %v511
    %v720 = vpack.c.b16 %v525, %v512
    %v721 = vpack.c.b16 %v539, %v526
    %v722 = vpack.c.b16 %v540, %v527
    %v723 = vpack.c.b16 %v541, %v528
    %v724 = vpack.c.b16 %v542, %v529
    %v725 = vpack.c.b16 %v543, %v530
    %v726 = vpack.c.b16 %v544, %v531
    %v727 = vpack.c.b16 %v545, %v532
    %v728 = vpack.c.b16 %v546, %v533
    %v729 = vpack.c.b16 %v547, %v534
    %v730 = vpack.c.b16 %v548, %v535
    %v731 = vpack.c.b16 %v549, %v536
    %v732 = vpack.c.b16 %v550, %v537
    %v733 = vpack.c.b16 %v551, %v538
    %v734 = vpack.c.b16 %v565, %v552
    %v735 = vpack.c.b16 %v566, %v553
    %v736 = vpack.c.b16 %v567, %v554
    %v737 = vpack.c.b16 %v568, %v555
    %v738 = vpack.c.b16 %v569, %v556
    %v739 = vpack.c.b16 %v570, %v557
    %v740 = vpack.c.b16 %v571, %v558
    %v741 = vpack.c.b16 %v572, %v559
    %v742 = vpack.c.b16 %v573, %v560
    %v743 = vpack.c.b16 %v574, %v561
    %v744 = vpack.c.b16 %v575, %v562
    %v745 = vpack.c.b16 %v576, %v563
    %v746 = vpack.c.b16 %v577, %v564
    %v747 = vpack.c.b16 %v591, %v578
    %v748 = vpack.c.b16 %v592, %v579
    %v749 = vpack.c.b16 %v593, %v580
    %v750 = vpack.c.b16 %v594, %v581
    %v751 = vpack.c.b16 %v595, %v582
    %v752 = vpack.c.b16 %v596, %v583
    %v753 = vpack.c.b16 %v597, %v584
    %v754 = vpack.c.b16 %v598, %v585
    %v755 = vpack.c.b16 %v599, %v586
    %v756 = vpack.c.b16 %v600, %v587
    %v757 = vpack.c.b16 %v601, %v588
    %v758 = vpack.c.b16 %v602, %v589
    %v759 = vpack.c.b16 %v603, %v590
    %v760 = vpack.c.b16 %v617, %v604
    %v761 = vpack.c.b16 %v618, %v605
    %v762 = vpack.c.b16 %v619, %v606
    %v763 = vpack.c.b16 %v620, %v607
    %v764 = vpack.c.b16 %v621, %v608
    %v765 = vpack.c.b16 %v622, %v609
    %v766 = vpack.c.b16 %v623, %v610
    %v767 = vpack.c.b16 %v624, %v611
    %v768 = vpack.c.b16 %v625, %v612
    %v769 = vpack.c.b16 %v626, %v613
    %v770 = vpack.c.b16 %v627, %v614
    %v771 = vpack.c.b16 %v628, %v615
    %v772 = vpack.c.b16 %v629, %v616
    %v773 = vpack.c.b16 %v643, %v630
    %v774 = vpack.c.b16 %v644, %v631
    %v775 = vpack.c.b16 %v645, %v632
    %v776 = vpack.c.b16 %v646, %v633
    %v777 = vpack.c.b16 %v647, %v634
    %v778 = vpack.c.b16 %v648, %v635
    %v779 = vpack.c.b16 %v649, %v636
    %v780 = vpack.c.b16 %v650, %v637
    %v781 = vpack.c.b16 %v651, %v638
    %v782 = vpack.c.b16 %v652, %v639
    %v783 = vpack.c.b16 %v653, %v640
    %v784 = vpack.c.b16 %v654, %v641
    %v785 = vpack.c.b16 %v655, %v642
    %v786 = vpack.c.b16 %v669, %v656
    %v787 = vpack.c.b16 %v670, %v657
    %v788 = vpack.c.b16 %v671, %v658
    %v789 = vpack.c.b16 %v672, %v659
    %v790 = vpack.c.b16 %v673, %v660
    %v791 = vpack.c.b16 %v674, %v661
    %v792 = vpack.c.b16 %v675, %v662
    %v793 = vpack.c.b16 %v676, %v663
    %v794 = vpack.c.b16 %v677, %v664
    %v795 = vpack.c.b16 %v678, %v665
    %v796 = vpack.c.b16 %v679, %v666
    %v797 = vpack.c.b16 %v680, %v667
    %v798 = vpack.c.b16 %v681, %v668
    %v799 = vpack.c.b16 %v695, %v682
    %v800 = vpack.c.b16 %v696, %v683
    %v801 = vpack.c.b16 %v697, %v684
    %v802 = vpack.c.b16 %v698, %v685
    %v803 = vpack.c.b16 %v699, %v686
    %v804 = vpack.c.b16 %v700, %v687
    %v805 = vpack.c.b16 %v701, %v688
    %v806 = vpack.c.b16 %v702, %v689
    %v807 = vpack.c.b16 %v703, %v690
    %v808 = vpack.c.b16 %v704, %v691
    %v809 = vpack.c.b16 %v705, %v692
    %v810 = vpack.c.b16 %v706, %v693
    %v811 = vpack.c.b16 %v707, %v694
    %v1108 = vunpack.c.l.b16 %v181
    %v1109 = vunpack.c.l.b16 %v182
    %v1110 = vunpack.c.l.b16 %v183
    %v1111 = vunpack.c.l.b16 %v184
    %v1112 = vunpack.c.l.b16 %v185
    %v1113 = vunpack.c.l.b16 %v186
    %v1114 = vunpack.c.l.b16 %v187
    %v1115 = vunpack.c.l.b16 %v188
    %v1116 = vunpack.c.l.b16 %v189
    %v1117 = vunpack.c.l.b16 %v190
    %v1118 = vunpack.c.l.b16 %v191
    %v1119 = vunpack.c.l.b16 %v192
    %v1120 = vunpack.c.l.b16 %v193
    %v1121 = vunpack.c.l.b16 %v194
    %v1122 = vunpack.c.l.b16 %v195
    %v1123 = vunpack.c.l.b16 %v196
    %v1124 = vunpack.c.l.b16 %v197
    %v1125 = vunpack.c.l.b16 %v198
    %v1126 = vunpack.c.l.b16 %v199
    %v1127 = vunpack.c.l.b16 %v200
    %v1128 = vunpack.c.l.b16 %v201
    %v1129 = vunpack.c.l.b16 %v202
    %v1130 = vunpack.c.l.b16 %v203
    %v1131 = vunpack.c.l.b16 %v204
    %v1132 = vunpack.c.l.b16 %v205
    %v1133 = vunpack.c.l.b16 %v206
    %v1134 = vunpack.c.l.b16 %v207
    %v1135 = vunpack.c.l.b16 %v208
    %v1136 = vunpack.c.l.b16 %v209
    %v1137 = vunpack.c.l.b16 %v210
    %v1138 = vunpack.c.l.b16 %v211
    %v1139 = vunpack.c.l.b16 %v212
    %v1140 = vunpack.c.l.b16 %v213
    %v1141 = vunpack.c.l.b16 %v214
    %v1142 = vunpack.c.l.b16 %v215
    %v1143 = vunpack.c.l.b16 %v216
    %v1144 = vunpack.c.l.b16 %v217
    %v1145 = vunpack.c.l.b16 %v218
    %v1146 = vunpack.c.l.b16 %v219
    %v1147 = vunpack.c.l.b16 %v220
    %v1148 = vunpack.c.l.b16 %v221
    %v1149 = vunpack.c.l.b16 %v222
    %v1150 = vunpack.c.l.b16 %v223
    %v1151 = vunpack.c.l.b16 %v224
    %v1152 = vunpack.c.l.b16 %v225
    %v1153 = vunpack.c.l.b16 %v226
    %v1154 = vunpack.c.l.b16 %v227
    %v1155 = vunpack.c.l.b16 %v228
    %v1156 = vunpack.c.l.b16 %v229
    %v1157 = vunpack.c.l.b16 %v230
    %v1158 = vunpack.c.l.b16 %v231
    %v1159 = vunpack.c.l.b16 %v232
    %v1160 = vunpack.c.l.b16 %v233
    %v1161 = vunpack.c.l.b16 %v234
    %v1162 = vunpack.c.l.b16 %v235
    %v1163 = vunpack.c.l.b16 %v236
    %v1164 = vunpack.c.l.b16 %v237
    %v1165 = vunpack.c.l.b16 %v238
    %v1166 = vunpack.c.l.b16 %v239
    %v1167 = vunpack.c.l.b16 %v240
    %v1168 = vunpack.c.l.b16 %v241
    %v1169 = vunpack.c.l.b16 %v242
    %v1170 = vunpack.c.l.b16 %v243
    %v1171 = vunpack.c.l.b16 %v244
    %v1172 = vunpack.c.l.b16 %v245
    %v1173 = vunpack.c.l.b16 %v246
    %v1174 = vunpack.c.l.b16 %v247
    %v1175 = vunpack.c.l.b16 %v248
    %v1176 = vunpack.c.l.b16 %v249
    %v1177 = vunpack.c.l.b16 %v250
    %v1178 = vunpack.c.l.b16 %v251
    %v1179 = vunpack.c.l.b16 %v252
    %v1180 = vunpack.c.l.b16 %v253
    %v1181 = vunpack.c.l.b16 %v254
    %v1182 = vunpack.c.l.b16 %v255
    %v1183 = vunpack.c.l.b16 %v256
    %v1184 = vunpack.c.l.b16 %v257
    %v1185 = vunpack.c.l.b16 %v258
    %v1186 = vunpack.c.l.b16 %v259
    %v1187 = vunpack.c.l.b16 %v260
    %v1188 = vunpack.c.l.b16 %v261
    %v1189 = vunpack.c.l.b16 %v262
    %v1190 = vunpack.c.l.b16 %v263
    %v1191 = vunpack.c.l.b16 %v264
    %v1192 = vunpack.c.l.b16 %v265
    %v1193 = vunpack.c.l.b16 %v266
    %v1194 = vunpack.c.l.b16 %v267
    %v1195 = vunpack.c.l.b16 %v268
    %v1196 = vunpack.c.l.b16 %v269
    %v1197 = vunpack.c.l.b16 %v270
    %v1198 = vunpack.c.l.b16 %v271
    %v1199 = vunpack.c.l.b16 %v272
    %v1200 = vunpack.c.l.b16 %v273
    %v1201 = vunpack.c.l.b16 %v274
    %v1202 = vunpack.c.l.b16 %v275
    %v1203 = vunpack.c.l.b16 %v276
    %v1204 = vunpack.c.l.b16 %v277
    %v1205 = vunpack.c.l.b16 %v278
    %v1206 = vunpack.c.l.b16 %v279
    %v1207 = vunpack.c.l.b16 %v280
    %v1208 = vunpack.c.l.b16 %v281
    %v1209 = vunpack.c.l.b16 %v282
    %v1210 = vunpack.c.l.b16 %v283
    %v1211 = vunpack.c.l.b16 %v284
    %v1212 = vunpack.c.l.b16 %v285
    %v1213 = vunpack.c.l.b16 %v286
    %v1214 = vunpack.c.l.b16 %v287
    %v1215 = vunpack.c.l.b16 %v288
    %v1216 = vunpack.c.l.b16 %v289
    %v1217 = vunpack.c.l.b16 %v290
    %v1218 = vunpack.c.l.b16 %v291
    %v1219 = vunpack.c.l.b16 %v292
    %v1220 = vunpack.c.l.b16 %v293
    %v1221 = vunpack.c.l.b16 %v294
    %v1222 = vunpack.c.l.b16 %v295
    %v1223 = vunpack.c.l.b16 %v296
    %v1224 = vunpack.c.l.b16 %v297
    %v1225 = vunpack.c.l.b16 %v298
    %v1226 = vunpack.c.l.b16 %v299
    %v1227 = vunpack.c.l.b16 %v300
    %v1228 = vunpack.c.l.b16 %v301
    %v1229 = vunpack.c.l.b16 %v302
    %v1230 = vunpack.c.l.b16 %v303
    %v1231 = vunpack.c.l.b16 %v304
    %v1232 = vunpack.c.l.b16 %v305
    %v1233 = vunpack.c.l.b16 %v306
    %v1234 = vunpack.c.l.b16 %v307
    %v1235 = vunpack.c.l.b16 %v308
    %v1236 = vunpack.c.l.b16 %v309
    %v1237 = vunpack.c.l.b16 %v310
    %v1238 = vunpack.c.l.b16 %v311
    %v1239 = vunpack.c.l.b16 %v312
    %v1240 = vunpack.c.l.b16 %v313
    %v1241 = vunpack.c.l.b16 %v314
    %v1242 = vunpack.c.l.b16 %v315
    %v1243 = vunpack.c.l.b16 %v316
    %v1244 = vunpack.c.l.b16 %v317
    %v1245 = vunpack.c.l.b16 %v318
    %v1246 = vunpack.c.l.b16 %v319
    %v1247 = vunpack.c.l.b16 %v320
    %v1248 = vunpack.c.l.b16 %v321
    %v1249 = vunpack.c.l.b16 %v322
    %v1250 = vunpack.c.l.b16 %v323
    %v1251 = vunpack.c.l.b16 %v324
    %v1252 = vunpack.c.l.b16 %v325
    %v1253 = vunpack.c.l.b16 %v326
    %v1254 = vunpack.c.l.b16 %v327
    %v1255 = vunpack.c.l.b16 %v328
    %v1256 = vunpack.c.l.b16 %v329
    %v1257 = vunpack.c.l.b16 %v330
    %v1258 = vunpack.c.l.b16 %v331
    %v1259 = vunpack.c.l.b16 %v332
    %v1260 = vunpack.c.l.b16 %v333
    %v1261 = vunpack.c.l.b16 %v334
    %v1262 = vunpack.c.l.b16 %v335
    %v1263 = vunpack.c.l.b16 %v336
    %v1264 = vunpack.c.l.b16 %v337
    %v1265 = vunpack.c.l.b16 %v338
    %v1266 = vunpack.c.l.b16 %v339
    %v1267 = vunpack.c.l.b16 %v340
    %v1268 = vunpack.c.l.b16 %v341
    %v1269 = vunpack.c.l.b16 %v342
    %v1270 = vunpack.c.l.b16 %v343
    %v1271 = vunpack.c.l.b16 %v344
    %v1272 = vunpack.c.l.b16 %v345
    %v1273 = vunpack.c.l.b16 %v346
    %v1274 = vunpack.c.l.b16 %v347
    %v1275 = vunpack.c.l.b16 %v348
    %v1276 = vunpack.c.l.b16 %v349
    %v1277 = vunpack.c.l.b16 %v350
    %v1278 = vunpack.c.l.b16 %v351
    %v1279 = vunpack.c.l.b16 %v352
    %v1280 = vunpack.c.l.b16 %v353
    %v1281 = vunpack.c.l.b16 %v354
    %v1282 = vunpack.c.l.b16 %v355
    %v1283 = vunpack.c.l.b16 %v356
    %v1284 = vunpack.c.l.b16 %v357
    %v1285 = vunpack.c.l.b16 %v358
    %v1286 = vunpack.c.l.b16 %v359
    %v1287 = vunpack.c.l.b16 %v360
    %v1288 = vunpack.c.l.b16 %v361
    %v1289 = vunpack.c.l.b16 %v362
    %v1290 = vunpack.c.l.b16 %v363
    %v1291 = vunpack.c.l.b16 %v364
    %v1292 = vunpack.c.l.b16 %v365
    %v1293 = vunpack.c.l.b16 %v366
    %v1294 = vunpack.c.l.b16 %v367
    %v1295 = vunpack.c.l.b16 %v368
    %v1296 = vunpack.c.l.b16 %v369
    %v1297 = vunpack.c.l.b16 %v370
    %v1298 = vunpack.c.l.b16 %v371
    %v1299 = vunpack.c.l.b16 %v372
    %v1300 = vunpack.c.l.b16 %v373
    %v1301 = vunpack.c.l.b16 %v374
    %v1302 = vunpack.c.l.b16 %v375
    %v1303 = vunpack.c.l.b16 %v376
    %v1304 = vunpack.c.l.b16 %v377
    %v1305 = vunpack.c.l.b16 %v378
    %v1306 = vunpack.c.l.b16 %v379
    %v1307 = vunpack.c.l.b16 %v380
    %v1308 = vpack.c.b16 %v1109, %v1108
    %v1309 = vpack.c.b16 %v1111, %v1110
    %v1310 = vpack.c.b16 %v1113, %v1112
    %v1311 = vpack.c.b16 %v1115, %v1114
    %v1312 = vpack.c.b16 %v1117, %v1116
    %v1313 = vpack.c.b16 %v1119, %v1118
    %v1314 = vpack.c.b16 %v1121, %v1120
    %v1315 = vpack.c.b16 %v1123, %v1122
    %v1316 = vpack.c.b16 %v1125, %v1124
    %v1317 = vpack.c.b16 %v1127, %v1126
    %v1318 = vpack.c.b16 %v1129, %v1128
    %v1319 = vpack.c.b16 %v1131, %v1130
    %v1320 = vpack.c.b16 %v1133, %v1132
    %v1321 = vpack.c.b16 %v1135, %v1134
    %v1322 = vpack.c.b16 %v1137, %v1136
    %v1323 = vpack.c.b16 %v1139, %v1138
    %v1324 = vpack.c.b16 %v1141, %v1140
    %v1325 = vpack.c.b16 %v1143, %v1142
    %v1326 = vpack.c.b16 %v1145, %v1144
    %v1327 = vpack.c.b16 %v1147, %v1146
    %v1328 = vpack.c.b16 %v1149, %v1148
    %v1329 = vpack.c.b16 %v1151, %v1150
    %v1330 = vpack.c.b16 %v1153, %v1152
    %v1331 = vpack.c.b16 %v1155, %v1154
    %v1332 = vpack.c.b16 %v1157, %v1156
    %v1333 = vpack.c.b16 %v1159, %v1158
    %v1334 = vpack.c.b16 %v1161, %v1160
    %v1335 = vpack.c.b16 %v1163, %v1162
    %v1336 = vpack.c.b16 %v1165, %v1164
    %v1337 = vpack.c.b16 %v1167, %v1166
    %v1338 = vpack.c.b16 %v1169, %v1168
    %v1339 = vpack.c.b16 %v1171, %v1170
    %v1340 = vpack.c.b16 %v1173, %v1172
    %v1341 = vpack.c.b16 %v1175, %v1174
    %v1342 = vpack.c.b16 %v1177, %v1176
    %v1343 = vpack.c.b16 %v1179, %v1178
    %v1344 = vpack.c.b16 %v1181, %v1180
    %v1345 = vpack.c.b16 %v1183, %v1182
    %v1346 = vpack.c.b16 %v1185, %v1184
    %v1347 = vpack.c.b16 %v1187, %v1186
    %v1348 = vpack.c.b16 %v1189, %v1188
    %v1349 = vpack.c.b16 %v1191, %v1190
    %v1350 = vpack.c.b16 %v1193, %v1192
    %v1351 = vpack.c.b16 %v1195, %v1194
    %v1352 = vpack.c.b16 %v1197, %v1196
    %v1353 = vpack.c.b16 %v1199, %v1198
    %v1354 = vpack.c.b16 %v1201, %v1200
    %v1355 = vpack.c.b16 %v1203, %v1202
    %v1356 = vpack.c.b16 %v1205, %v1204
    %v1357 = vpack.c.b16 %v1207, %v1206
    %v1358 = vpack.c.b16 %v1209, %v1208
    %v1359 = vpack.c.b16 %v1211, %v1210
    %v1360 = vpack.c.b16 %v1213, %v1212
    %v1361 = vpack.c.b16 %v1215, %v1214
    %v1362 = vpack.c.b16 %v1217, %v1216
    %v1363 = vpack.c.b16 %v1219, %v1218
    %v1364 = vpack.c.b16 %v1221, %v1220
    %v1365 = vpack.c.b16 %v1223, %v1222
    %v1366 = vpack.c.b16 %v1225, %v1224
    %v1367 = vpack.c.b16 %v1227, %v1226
    %v1368 = vpack.c.b16 %v1229, %v1228
    %v1369 = vpack.c.b16 %v1231, %v1230
    %v1370 = vpack.c.b16 %v1233, %v1232
    %v1371 = vpack.c.b16 %v1235, %v1234
    %v1372 = vpack.c.b16 %v1237, %v1236
    %v1373 = vpack.c.b16 %v1239, %v1238
    %v1374 = vpack.c.b16 %v1241, %v1240
    %v1375 = vpack.c.b16 %v1243, %v1242
    %v1376 = vpack.c.b16 %v1245, %v1244
    %v1377 = vpack.c.b16 %v1247, %v1246
    %v1378 = vpack.c.b16 %v1249, %v1248
    %v1379 = vpack.c.b16 %v1251, %v1250
    %v1380 = vpack.c.b16 %v1253, %v1252
    %v1381 = vpack.c.b16 %v1255, %v1254
    %v1382 = vpack.c.b16 %v1257, %v1256
    %v1383 = vpack.c.b16 %v1259, %v1258
    %v1384 = vpack.c.b16 %v1261, %v1260
    %v1385 = vpack.c.b16 %v1263, %v1262
    %v1386 = vpack.c.b16 %v1265, %v1264
    %v1387 = vpack.c.b16 %v1267, %v1266
    %v1388 = vpack.c.b16 %v1269, %v1268
    %v1389 = vpack.c.b16 %v1271, %v1270
    %v1390 = vpack.c.b16 %v1273, %v1272
    %v1391 = vpack.c.b16 %v1275, %v1274
    %v1392 = vpack.c.b16 %v1277, %v1276
    %v1393 = vpack.c.b16 %v1279, %v1278
    %v1394 = vpack.c.b16 %v1281, %v1280
    %v1395 = vpack.c.b16 %v1283, %v1282
    %v1396 = vpack.c.b16 %v1285, %v1284
    %v1397 = vpack.c.b16 %v1287, %v1286
    %v1398 = vpack.c.b16 %v1289, %v1288
    %v1399 = vpack.c.b16 %v1291, %v1290
    %v1400 = vpack.c.b16 %v1293, %v1292
    %v1401 = vpack.c.b16 %v1295, %v1294
    %v1402 = vpack.c.b16 %v1297, %v1296
    %v1403 = vpack.c.b16 %v1299, %v1298
    %v1404 = vpack.c.b16 %v1301, %v1300
    %v1405 = vpack.c.b16 %v1303, %v1302
    %v1406 = vpack.c.b16 %v1305, %v1304
    %v1407 = vpack.c.b16 %v1307, %v1306
    %vm1508 = vcmask 523264
    %v1510 = vsel %vm1508, %v720, 0
    %v1513 = vsel %vm1508, %v733, 0
    %v1516 = vsel %vm1508, %v746, 0
    %v1519 = vsel %vm1508, %v759, 0
    %v1522 = vsel %vm1508, %v772, 0
    %v1525 = vsel %vm1508, %v785, 0
    %v1528 = vsel %vm1508, %v798, 0
    %v1531 = vsel %vm1508, %v811, 0
    %1533 = vmatprep.subr.bf16.mxu0 0
    %1534 = vmatpush1.bf16.msra.mxu0 %v1315
    %1535 = vmatprep.subr.bf16.mxu0 0
    %1536 = vmatpush1.bf16.msra.mxu0 %v1314
    %1537 = vmatprep.subr.bf16.mxu0 0
    %1538 = vmatpush1.bf16.msra.mxu0 %v1313
    %1539 = vmatprep.subr.bf16.mxu0 0
    %1540 = vmatpush1.bf16.msra.mxu0 %v1312
    %1541 = vmatprep.subr.bf16.mxu0 0
    %1542 = vmatpush1.bf16.msra.mxu0 %v1311
    %1543 = vmatprep.subr.bf16.mxu0 0
    %1544 = vmatpush1.bf16.msra.mxu0 %v1310
    %1545 = vmatprep.subr.bf16.mxu0 0
    %1546 = vmatpush1.bf16.msra.mxu0 %v1309
    %1547 = vmatprep.subr.bf16.mxu0 0
    %1548 = vmatpush1.bf16.msra.mxu0 %v1308
    %1549 = vmatprep.subr.bf16.mxu0 0
    %1550 = vmatpush2.bf16.msra.mxu0 %v1323
    %1551 = vmatprep.subr.bf16.mxu0 0
    %1552 = vmatpush2.bf16.msra.mxu0 %v1322
    %1553 = vmatprep.subr.bf16.mxu0 0
    %1554 = vmatpush2.bf16.msra.mxu0 %v1321
    %1555 = vmatprep.subr.bf16.mxu0 0
    %1556 = vmatpush2.bf16.msra.mxu0 %v1320
    %1557 = vmatprep.subr.bf16.mxu0 0
    %1558 = vmatpush2.bf16.msra.mxu0 %v1319
    %1559 = vmatprep.subr.bf16.mxu0 0
    %1560 = vmatpush2.bf16.msra.mxu0 %v1318
    %1561 = vmatprep.subr.bf16.mxu0 0
    %1562 = vmatpush2.bf16.msra.mxu0 %v1317
    %1563 = vmatprep.subr.bf16.mxu0 0
    %1564 = vmatpush2.bf16.msra.mxu0 %v1316
    %1565 = vmatprep.mubr.bf16.mxu0 %v709
    %1566 = vmatmul.mubr.bf16.gmra.mxu0 %v708
    %v1567 = vpop.f32.mrf.mxu0
    %v1568 = vadd.f32 %v386, %v1567
    %v1569 = vpop.f32.mrf.mxu0
    %v1570 = vpop.f32.mrf.mxu0
    %v1571 = vadd.f32 %v386, %v1570
    %v1572 = vpop.f32.mrf.mxu0
    %1573 = vmatprep.mubr.bf16.mxu0 %v722
    %1574 = vmatmul.mubr.bf16.gmra.mxu0 %v721
    %v1575 = vpop.f32.mrf.mxu0
    %v1576 = vadd.f32 %v386, %v1575
    %v1577 = vpop.f32.mrf.mxu0
    %v1578 = vpop.f32.mrf.mxu0
    %v1579 = vadd.f32 %v386, %v1578
    %v1580 = vpop.f32.mrf.mxu0
    %1581 = vmatprep.mubr.bf16.mxu0 %v735
    %1582 = vmatmul.mubr.bf16.gmra.mxu0 %v734
    %v1583 = vpop.f32.mrf.mxu0
    %v1584 = vadd.f32 %v386, %v1583
    %v1585 = vpop.f32.mrf.mxu0
    %v1586 = vpop.f32.mrf.mxu0
    %v1587 = vadd.f32 %v386, %v1586
    %v1588 = vpop.f32.mrf.mxu0
    %1589 = vmatprep.mubr.bf16.mxu0 %v748
    %1590 = vmatmul.mubr.bf16.gmra.mxu0 %v747
    %v1591 = vpop.f32.mrf.mxu0
    %v1592 = vadd.f32 %v386, %v1591
    %v1593 = vpop.f32.mrf.mxu0
    %v1594 = vpop.f32.mrf.mxu0
    %v1595 = vadd.f32 %v386, %v1594
    %v1596 = vpop.f32.mrf.mxu0
    %1597 = vmatprep.mubr.bf16.mxu0 %v761
    %1598 = vmatmul.mubr.bf16.gmra.mxu0 %v760
    %v1599 = vpop.f32.mrf.mxu0
    %v1600 = vadd.f32 %v386, %v1599
    %v1601 = vpop.f32.mrf.mxu0
    %v1602 = vpop.f32.mrf.mxu0
    %v1603 = vadd.f32 %v386, %v1602
    %v1604 = vpop.f32.mrf.mxu0
    %1605 = vmatprep.mubr.bf16.mxu0 %v774
    %1606 = vmatmul.mubr.bf16.gmra.mxu0 %v773
    %v1607 = vpop.f32.mrf.mxu0
    %v1608 = vadd.f32 %v386, %v1607
    %v1609 = vpop.f32.mrf.mxu0
    %v1610 = vpop.f32.mrf.mxu0
    %v1611 = vadd.f32 %v386, %v1610
    %v1612 = vpop.f32.mrf.mxu0
    %1613 = vmatprep.mubr.bf16.mxu0 %v787
    %1614 = vmatmul.mubr.bf16.gmra.mxu0 %v786
    %v1615 = vpop.f32.mrf.mxu0
    %v1616 = vadd.f32 %v386, %v1615
    %v1617 = vpop.f32.mrf.mxu0
    %v1618 = vpop.f32.mrf.mxu0
    %v1619 = vadd.f32 %v386, %v1618
    %v1620 = vpop.f32.mrf.mxu0
    %1621 = vmatprep.mubr.bf16.mxu0 %v800
    %1622 = vmatmul.mubr.bf16.gmra.mxu0 %v799
    %v1623 = vpop.f32.mrf.mxu0
    %v1624 = vadd.f32 %v386, %v1623
    %v1625 = vpop.f32.mrf.mxu0
    %v1626 = vpop.f32.mrf.mxu0
    %v1627 = vadd.f32 %v386, %v1626
    %v1628 = vpop.f32.mrf.mxu0
    %1629 = vdwg.mxu0
    %1630 = vmatprep.subr.bf16.mxu0 0
    %1631 = vmatpush1.bf16.msra.mxu0 %v1331
    %1632 = vmatprep.subr.bf16.mxu0 0
    %1633 = vmatpush1.bf16.msra.mxu0 %v1330
    %1634 = vmatprep.subr.bf16.mxu0 0
    %1635 = vmatpush1.bf16.msra.mxu0 %v1329
    %1636 = vmatprep.subr.bf16.mxu0 0
    %1637 = vmatpush1.bf16.msra.mxu0 %v1328
    %1638 = vmatprep.subr.bf16.mxu0 0
    %1639 = vmatpush1.bf16.msra.mxu0 %v1327
    %1640 = vmatprep.subr.bf16.mxu0 0
    %1641 = vmatpush1.bf16.msra.mxu0 %v1326
    %1642 = vmatprep.subr.bf16.mxu0 0
    %1643 = vmatpush1.bf16.msra.mxu0 %v1325
    %1644 = vmatprep.subr.bf16.mxu0 0
    %1645 = vmatpush1.bf16.msra.mxu0 %v1324
    %1646 = vmatprep.subr.bf16.mxu0 0
    %1647 = vmatpush2.bf16.msra.mxu0 %v1339
    %1648 = vmatprep.subr.bf16.mxu0 0
    %1649 = vmatpush2.bf16.msra.mxu0 %v1338
    %1650 = vmatprep.subr.bf16.mxu0 0
    %1651 = vmatpush2.bf16.msra.mxu0 %v1337
    %1652 = vmatprep.subr.bf16.mxu0 0
    %1653 = vmatpush2.bf16.msra.mxu0 %v1336
    %1654 = vmatprep.subr.bf16.mxu0 0
    %1655 = vmatpush2.bf16.msra.mxu0 %v1335
    %1656 = vmatprep.subr.bf16.mxu0 0
    %1657 = vmatpush2.bf16.msra.mxu0 %v1334
    %1658 = vmatprep.subr.bf16.mxu0 0
    %1659 = vmatpush2.bf16.msra.mxu0 %v1333
    %1660 = vmatprep.subr.bf16.mxu0 0
    %1661 = vmatpush2.bf16.msra.mxu0 %v1332
    %1662 = vmatprep.mubr.bf16.mxu0 %v711
    %1663 = vmatmul.mubr.bf16.gmra.mxu0 %v710
    %v1664 = vpop.f32.mrf.mxu0
    %v1665 = vadd.f32 %v1568, %v1664
    %v1666 = vpop.f32.mrf.mxu0
    %v1667 = vpop.f32.mrf.mxu0
    %v1668 = vadd.f32 %v1571, %v1667
    %v1669 = vpop.f32.mrf.mxu0
    %1670 = vmatprep.mubr.bf16.mxu0 %v724
    %1671 = vmatmul.mubr.bf16.gmra.mxu0 %v723
    %v1672 = vpop.f32.mrf.mxu0
    %v1673 = vadd.f32 %v1576, %v1672
    %v1674 = vpop.f32.mrf.mxu0
    %v1675 = vpop.f32.mrf.mxu0
    %v1676 = vadd.f32 %v1579, %v1675
    %v1677 = vpop.f32.mrf.mxu0
    %1678 = vmatprep.mubr.bf16.mxu0 %v737
    %1679 = vmatmul.mubr.bf16.gmra.mxu0 %v736
    %v1680 = vpop.f32.mrf.mxu0
    %v1681 = vadd.f32 %v1584, %v1680
    %v1682 = vpop.f32.mrf.mxu0
    %v1683 = vpop.f32.mrf.mxu0
    %v1684 = vadd.f32 %v1587, %v1683
    %v1685 = vpop.f32.mrf.mxu0
    %1686 = vmatprep.mubr.bf16.mxu0 %v750
    %1687 = vmatmul.mubr.bf16.gmra.mxu0 %v749
    %v1688 = vpop.f32.mrf.mxu0
    %v1689 = vadd.f32 %v1592, %v1688
    %v1690 = vpop.f32.mrf.mxu0
    %v1691 = vpop.f32.mrf.mxu0
    %v1692 = vadd.f32 %v1595, %v1691
    %v1693 = vpop.f32.mrf.mxu0
    %1694 = vmatprep.mubr.bf16.mxu0 %v763
    %1695 = vmatmul.mubr.bf16.gmra.mxu0 %v762
    %v1696 = vpop.f32.mrf.mxu0
    %v1697 = vadd.f32 %v1600, %v1696
    %v1698 = vpop.f32.mrf.mxu0
    %v1699 = vpop.f32.mrf.mxu0
    %v1700 = vadd.f32 %v1603, %v1699
    %v1701 = vpop.f32.mrf.mxu0
    %1702 = vmatprep.mubr.bf16.mxu0 %v776
    %1703 = vmatmul.mubr.bf16.gmra.mxu0 %v775
    %v1704 = vpop.f32.mrf.mxu0
    %v1705 = vadd.f32 %v1608, %v1704
    %v1706 = vpop.f32.mrf.mxu0
    %v1707 = vpop.f32.mrf.mxu0
    %v1708 = vadd.f32 %v1611, %v1707
    %v1709 = vpop.f32.mrf.mxu0
    %1710 = vmatprep.mubr.bf16.mxu0 %v789
    %1711 = vmatmul.mubr.bf16.gmra.mxu0 %v788
    %v1712 = vpop.f32.mrf.mxu0
    %v1713 = vadd.f32 %v1616, %v1712
    %v1714 = vpop.f32.mrf.mxu0
    %v1715 = vpop.f32.mrf.mxu0
    %v1716 = vadd.f32 %v1619, %v1715
    %v1717 = vpop.f32.mrf.mxu0
    %1718 = vmatprep.mubr.bf16.mxu0 %v802
    %1719 = vmatmul.mubr.bf16.gmra.mxu0 %v801
    %v1720 = vpop.f32.mrf.mxu0
    %v1721 = vadd.f32 %v1624, %v1720
    %v1722 = vpop.f32.mrf.mxu0
    %v1723 = vpop.f32.mrf.mxu0
    %v1724 = vadd.f32 %v1627, %v1723
    %v1725 = vpop.f32.mrf.mxu0
    %1726 = vdwg.mxu0
    %1727 = vmatprep.subr.bf16.mxu0 0
    %1728 = vmatpush1.bf16.msra.mxu0 %v1347
    %1729 = vmatprep.subr.bf16.mxu0 0
    %1730 = vmatpush1.bf16.msra.mxu0 %v1346
    %1731 = vmatprep.subr.bf16.mxu0 0
    %1732 = vmatpush1.bf16.msra.mxu0 %v1345
    %1733 = vmatprep.subr.bf16.mxu0 0
    %1734 = vmatpush1.bf16.msra.mxu0 %v1344
    %1735 = vmatprep.subr.bf16.mxu0 0
    %1736 = vmatpush1.bf16.msra.mxu0 %v1343
    %1737 = vmatprep.subr.bf16.mxu0 0
    %1738 = vmatpush1.bf16.msra.mxu0 %v1342
    %1739 = vmatprep.subr.bf16.mxu0 0
    %1740 = vmatpush1.bf16.msra.mxu0 %v1341
    %1741 = vmatprep.subr.bf16.mxu0 0
    %1742 = vmatpush1.bf16.msra.mxu0 %v1340
    %1743 = vmatprep.subr.bf16.mxu0 0
    %1744 = vmatpush2.bf16.msra.mxu0 %v1355
    %1745 = vmatprep.subr.bf16.mxu0 0
    %1746 = vmatpush2.bf16.msra.mxu0 %v1354
    %1747 = vmatprep.subr.bf16.mxu0 0
    %1748 = vmatpush2.bf16.msra.mxu0 %v1353
    %1749 = vmatprep.subr.bf16.mxu0 0
    %1750 = vmatpush2.bf16.msra.mxu0 %v1352
    %1751 = vmatprep.subr.bf16.mxu0 0
    %1752 = vmatpush2.bf16.msra.mxu0 %v1351
    %1753 = vmatprep.subr.bf16.mxu0 0
    %1754 = vmatpush2.bf16.msra.mxu0 %v1350
    %1755 = vmatprep.subr.bf16.mxu0 0
    %1756 = vmatpush2.bf16.msra.mxu0 %v1349
    %1757 = vmatprep.subr.bf16.mxu0 0
    %1758 = vmatpush2.bf16.msra.mxu0 %v1348
    %1759 = vmatprep.mubr.bf16.mxu0 %v713
    %1760 = vmatmul.mubr.bf16.gmra.mxu0 %v712
    %v1761 = vpop.f32.mrf.mxu0
    %v1762 = vadd.f32 %v1665, %v1761
    %v1763 = vpop.f32.mrf.mxu0
    %v1764 = vpop.f32.mrf.mxu0
    %v1765 = vadd.f32 %v1668, %v1764
    %v1766 = vpop.f32.mrf.mxu0
    %1767 = vmatprep.mubr.bf16.mxu0 %v726
    %1768 = vmatmul.mubr.bf16.gmra.mxu0 %v725
    %v1769 = vpop.f32.mrf.mxu0
    %v1770 = vadd.f32 %v1673, %v1769
    %v1771 = vpop.f32.mrf.mxu0
    %v1772 = vpop.f32.mrf.mxu0
    %v1773 = vadd.f32 %v1676, %v1772
    %v1774 = vpop.f32.mrf.mxu0
    %1775 = vmatprep.mubr.bf16.mxu0 %v739
    %1776 = vmatmul.mubr.bf16.gmra.mxu0 %v738
    %v1777 = vpop.f32.mrf.mxu0
    %v1778 = vadd.f32 %v1681, %v1777
    %v1779 = vpop.f32.mrf.mxu0
    %v1780 = vpop.f32.mrf.mxu0
    %v1781 = vadd.f32 %v1684, %v1780
    %v1782 = vpop.f32.mrf.mxu0
    %1783 = vmatprep.mubr.bf16.mxu0 %v752
    %1784 = vmatmul.mubr.bf16.gmra.mxu0 %v751
    %v1785 = vpop.f32.mrf.mxu0
    %v1786 = vadd.f32 %v1689, %v1785
    %v1787 = vpop.f32.mrf.mxu0
    %v1788 = vpop.f32.mrf.mxu0
    %v1789 = vadd.f32 %v1692, %v1788
    %v1790 = vpop.f32.mrf.mxu0
    %1791 = vmatprep.mubr.bf16.mxu0 %v765
    %1792 = vmatmul.mubr.bf16.gmra.mxu0 %v764
    %v1793 = vpop.f32.mrf.mxu0
    %v1794 = vadd.f32 %v1697, %v1793
    %v1795 = vpop.f32.mrf.mxu0
    %v1796 = vpop.f32.mrf.mxu0
    %v1797 = vadd.f32 %v1700, %v1796
    %v1798 = vpop.f32.mrf.mxu0
    %1799 = vmatprep.mubr.bf16.mxu0 %v778
    %1800 = vmatmul.mubr.bf16.gmra.mxu0 %v777
    %v1801 = vpop.f32.mrf.mxu0
    %v1802 = vadd.f32 %v1705, %v1801
    %v1803 = vpop.f32.mrf.mxu0
    %v1804 = vpop.f32.mrf.mxu0
    %v1805 = vadd.f32 %v1708, %v1804
    %v1806 = vpop.f32.mrf.mxu0
    %1807 = vmatprep.mubr.bf16.mxu0 %v791
    %1808 = vmatmul.mubr.bf16.gmra.mxu0 %v790
    %v1809 = vpop.f32.mrf.mxu0
    %v1810 = vadd.f32 %v1713, %v1809
    %v1811 = vpop.f32.mrf.mxu0
    %v1812 = vpop.f32.mrf.mxu0
    %v1813 = vadd.f32 %v1716, %v1812
    %v1814 = vpop.f32.mrf.mxu0
    %1815 = vmatprep.mubr.bf16.mxu0 %v804
    %1816 = vmatmul.mubr.bf16.gmra.mxu0 %v803
    %v1817 = vpop.f32.mrf.mxu0
    %v1818 = vadd.f32 %v1721, %v1817
    %v1819 = vpop.f32.mrf.mxu0
    %v1820 = vpop.f32.mrf.mxu0
    %v1821 = vadd.f32 %v1724, %v1820
    %v1822 = vpop.f32.mrf.mxu0
    %1823 = vdwg.mxu0
    %1824 = vmatprep.subr.bf16.mxu0 0
    %1825 = vmatpush1.bf16.msra.mxu0 %v1363
    %1826 = vmatprep.subr.bf16.mxu0 0
    %1827 = vmatpush1.bf16.msra.mxu0 %v1362
    %1828 = vmatprep.subr.bf16.mxu0 0
    %1829 = vmatpush1.bf16.msra.mxu0 %v1361
    %1830 = vmatprep.subr.bf16.mxu0 0
    %1831 = vmatpush1.bf16.msra.mxu0 %v1360
    %1832 = vmatprep.subr.bf16.mxu0 0
    %1833 = vmatpush1.bf16.msra.mxu0 %v1359
    %1834 = vmatprep.subr.bf16.mxu0 0
    %1835 = vmatpush1.bf16.msra.mxu0 %v1358
    %1836 = vmatprep.subr.bf16.mxu0 0
    %1837 = vmatpush1.bf16.msra.mxu0 %v1357
    %1838 = vmatprep.subr.bf16.mxu0 0
    %1839 = vmatpush1.bf16.msra.mxu0 %v1356
    %1840 = vmatprep.subr.bf16.mxu0 0
    %1841 = vmatpush2.bf16.msra.mxu0 %v1371
    %1842 = vmatprep.subr.bf16.mxu0 0
    %1843 = vmatpush2.bf16.msra.mxu0 %v1370
    %1844 = vmatprep.subr.bf16.mxu0 0
    %1845 = vmatpush2.bf16.msra.mxu0 %v1369
    %1846 = vmatprep.subr.bf16.mxu0 0
    %1847 = vmatpush2.bf16.msra.mxu0 %v1368
    %1848 = vmatprep.subr.bf16.mxu0 0
    %1849 = vmatpush2.bf16.msra.mxu0 %v1367
    %1850 = vmatprep.subr.bf16.mxu0 0
    %1851 = vmatpush2.bf16.msra.mxu0 %v1366
    %1852 = vmatprep.subr.bf16.mxu0 0
    %1853 = vmatpush2.bf16.msra.mxu0 %v1365
    %1854 = vmatprep.subr.bf16.mxu0 0
    %1855 = vmatpush2.bf16.msra.mxu0 %v1364
    %1856 = vmatprep.mubr.bf16.mxu0 %v715
    %1857 = vmatmul.mubr.bf16.gmra.mxu0 %v714
    %v1858 = vpop.f32.mrf.mxu0
    %v1859 = vadd.f32 %v1762, %v1858
    %v1860 = vpop.f32.mrf.mxu0
    %v1861 = vpop.f32.mrf.mxu0
    %v1862 = vadd.f32 %v1765, %v1861
    %v1863 = vpop.f32.mrf.mxu0
    %1864 = vmatprep.mubr.bf16.mxu0 %v728
    %1865 = vmatmul.mubr.bf16.gmra.mxu0 %v727
    %v1866 = vpop.f32.mrf.mxu0
    %v1867 = vadd.f32 %v1770, %v1866
    %v1868 = vpop.f32.mrf.mxu0
    %v1869 = vpop.f32.mrf.mxu0
    %v1870 = vadd.f32 %v1773, %v1869
    %v1871 = vpop.f32.mrf.mxu0
    %1872 = vmatprep.mubr.bf16.mxu0 %v741
    %1873 = vmatmul.mubr.bf16.gmra.mxu0 %v740
    %v1874 = vpop.f32.mrf.mxu0
    %v1875 = vadd.f32 %v1778, %v1874
    %v1876 = vpop.f32.mrf.mxu0
    %v1877 = vpop.f32.mrf.mxu0
    %v1878 = vadd.f32 %v1781, %v1877
    %v1879 = vpop.f32.mrf.mxu0
    %1880 = vmatprep.mubr.bf16.mxu0 %v754
    %1881 = vmatmul.mubr.bf16.gmra.mxu0 %v753
    %v1882 = vpop.f32.mrf.mxu0
    %v1883 = vadd.f32 %v1786, %v1882
    %v1884 = vpop.f32.mrf.mxu0
    %v1885 = vpop.f32.mrf.mxu0
    %v1886 = vadd.f32 %v1789, %v1885
    %v1887 = vpop.f32.mrf.mxu0
    %1888 = vmatprep.mubr.bf16.mxu0 %v767
    %1889 = vmatmul.mubr.bf16.gmra.mxu0 %v766
    %v1890 = vpop.f32.mrf.mxu0
    %v1891 = vadd.f32 %v1794, %v1890
    %v1892 = vpop.f32.mrf.mxu0
    %v1893 = vpop.f32.mrf.mxu0
    %v1894 = vadd.f32 %v1797, %v1893
    %v1895 = vpop.f32.mrf.mxu0
    %1896 = vmatprep.mubr.bf16.mxu0 %v780
    %1897 = vmatmul.mubr.bf16.gmra.mxu0 %v779
    %v1898 = vpop.f32.mrf.mxu0
    %v1899 = vadd.f32 %v1802, %v1898
    %v1900 = vpop.f32.mrf.mxu0
    %v1901 = vpop.f32.mrf.mxu0
    %v1902 = vadd.f32 %v1805, %v1901
    %v1903 = vpop.f32.mrf.mxu0
    %1904 = vmatprep.mubr.bf16.mxu0 %v793
    %1905 = vmatmul.mubr.bf16.gmra.mxu0 %v792
    %v1906 = vpop.f32.mrf.mxu0
    %v1907 = vadd.f32 %v1810, %v1906
    %v1908 = vpop.f32.mrf.mxu0
    %v1909 = vpop.f32.mrf.mxu0
    %v1910 = vadd.f32 %v1813, %v1909
    %v1911 = vpop.f32.mrf.mxu0
    %1912 = vmatprep.mubr.bf16.mxu0 %v806
    %1913 = vmatmul.mubr.bf16.gmra.mxu0 %v805
    %v1914 = vpop.f32.mrf.mxu0
    %v1915 = vadd.f32 %v1818, %v1914
    %v1916 = vpop.f32.mrf.mxu0
    %v1917 = vpop.f32.mrf.mxu0
    %v1918 = vadd.f32 %v1821, %v1917
    %v1919 = vpop.f32.mrf.mxu0
    %1920 = vdwg.mxu0
    %1921 = vmatprep.subr.bf16.mxu0 0
    %1922 = vmatpush1.bf16.msra.mxu0 %v1379
    %1923 = vmatprep.subr.bf16.mxu0 0
    %1924 = vmatpush1.bf16.msra.mxu0 %v1378
    %1925 = vmatprep.subr.bf16.mxu0 0
    %1926 = vmatpush1.bf16.msra.mxu0 %v1377
    %1927 = vmatprep.subr.bf16.mxu0 0
    %1928 = vmatpush1.bf16.msra.mxu0 %v1376
    %1929 = vmatprep.subr.bf16.mxu0 0
    %1930 = vmatpush1.bf16.msra.mxu0 %v1375
    %1931 = vmatprep.subr.bf16.mxu0 0
    %1932 = vmatpush1.bf16.msra.mxu0 %v1374
    %1933 = vmatprep.subr.bf16.mxu0 0
    %1934 = vmatpush1.bf16.msra.mxu0 %v1373
    %1935 = vmatprep.subr.bf16.mxu0 0
    %1936 = vmatpush1.bf16.msra.mxu0 %v1372
    %1937 = vmatprep.subr.bf16.mxu0 0
    %1938 = vmatpush2.bf16.msra.mxu0 %v1387
    %1939 = vmatprep.subr.bf16.mxu0 0
    %1940 = vmatpush2.bf16.msra.mxu0 %v1386
    %1941 = vmatprep.subr.bf16.mxu0 0
    %1942 = vmatpush2.bf16.msra.mxu0 %v1385
    %1943 = vmatprep.subr.bf16.mxu0 0
    %1944 = vmatpush2.bf16.msra.mxu0 %v1384
    %1945 = vmatprep.subr.bf16.mxu0 0
    %1946 = vmatpush2.bf16.msra.mxu0 %v1383
    %1947 = vmatprep.subr.bf16.mxu0 0
    %1948 = vmatpush2.bf16.msra.mxu0 %v1382
    %1949 = vmatprep.subr.bf16.mxu0 0
    %1950 = vmatpush2.bf16.msra.mxu0 %v1381
    %1951 = vmatprep.subr.bf16.mxu0 0
    %1952 = vmatpush2.bf16.msra.mxu0 %v1380
    %1953 = vmatprep.mubr.bf16.mxu0 %v717
    %1954 = vmatmul.mubr.bf16.gmra.mxu0 %v716
    %v1955 = vpop.f32.mrf.mxu0
    %v1956 = vadd.f32 %v1859, %v1955
    %v1957 = vpop.f32.mrf.mxu0
    %v1958 = vpop.f32.mrf.mxu0
    %v1959 = vadd.f32 %v1862, %v1958
    %v1960 = vpop.f32.mrf.mxu0
    %1961 = vmatprep.mubr.bf16.mxu0 %v730
    %1962 = vmatmul.mubr.bf16.gmra.mxu0 %v729
    %v1963 = vpop.f32.mrf.mxu0
    %v1964 = vadd.f32 %v1867, %v1963
    %v1965 = vpop.f32.mrf.mxu0
    %v1966 = vpop.f32.mrf.mxu0
    %v1967 = vadd.f32 %v1870, %v1966
    %v1968 = vpop.f32.mrf.mxu0
    %1969 = vmatprep.mubr.bf16.mxu0 %v743
    %1970 = vmatmul.mubr.bf16.gmra.mxu0 %v742
    %v1971 = vpop.f32.mrf.mxu0
    %v1972 = vadd.f32 %v1875, %v1971
    %v1973 = vpop.f32.mrf.mxu0
    %v1974 = vpop.f32.mrf.mxu0
    %v1975 = vadd.f32 %v1878, %v1974
    %v1976 = vpop.f32.mrf.mxu0
    %1977 = vmatprep.mubr.bf16.mxu0 %v756
    %1978 = vmatmul.mubr.bf16.gmra.mxu0 %v755
    %v1979 = vpop.f32.mrf.mxu0
    %v1980 = vadd.f32 %v1883, %v1979
    %v1981 = vpop.f32.mrf.mxu0
    %v1982 = vpop.f32.mrf.mxu0
    %v1983 = vadd.f32 %v1886, %v1982
    %v1984 = vpop.f32.mrf.mxu0
    %1985 = vmatprep.mubr.bf16.mxu0 %v769
    %1986 = vmatmul.mubr.bf16.gmra.mxu0 %v768
    %v1987 = vpop.f32.mrf.mxu0
    %v1988 = vadd.f32 %v1891, %v1987
    %v1989 = vpop.f32.mrf.mxu0
    %v1990 = vpop.f32.mrf.mxu0
    %v1991 = vadd.f32 %v1894, %v1990
    %v1992 = vpop.f32.mrf.mxu0
    %1993 = vmatprep.mubr.bf16.mxu0 %v782
    %1994 = vmatmul.mubr.bf16.gmra.mxu0 %v781
    %v1995 = vpop.f32.mrf.mxu0
    %v1996 = vadd.f32 %v1899, %v1995
    %v1997 = vpop.f32.mrf.mxu0
    %v1998 = vpop.f32.mrf.mxu0
    %v1999 = vadd.f32 %v1902, %v1998
    %v2000 = vpop.f32.mrf.mxu0
    %2001 = vmatprep.mubr.bf16.mxu0 %v795
    %2002 = vmatmul.mubr.bf16.gmra.mxu0 %v794
    %v2003 = vpop.f32.mrf.mxu0
    %v2004 = vadd.f32 %v1907, %v2003
    %v2005 = vpop.f32.mrf.mxu0
    %v2006 = vpop.f32.mrf.mxu0
    %v2007 = vadd.f32 %v1910, %v2006
    %v2008 = vpop.f32.mrf.mxu0
    %2009 = vmatprep.mubr.bf16.mxu0 %v808
    %2010 = vmatmul.mubr.bf16.gmra.mxu0 %v807
    %v2011 = vpop.f32.mrf.mxu0
    %v2012 = vadd.f32 %v1915, %v2011
    %v2013 = vpop.f32.mrf.mxu0
    %v2014 = vpop.f32.mrf.mxu0
    %v2015 = vadd.f32 %v1918, %v2014
    %v2016 = vpop.f32.mrf.mxu0
    %2017 = vdwg.mxu0
    %2018 = vmatprep.subr.bf16.mxu0 0
    %2019 = vmatpush1.bf16.msra.mxu0 %v1395
    %2020 = vmatprep.subr.bf16.mxu0 0
    %2021 = vmatpush1.bf16.msra.mxu0 %v1394
    %2022 = vmatprep.subr.bf16.mxu0 0
    %2023 = vmatpush1.bf16.msra.mxu0 %v1393
    %2024 = vmatprep.subr.bf16.mxu0 0
    %2025 = vmatpush1.bf16.msra.mxu0 %v1392
    %2026 = vmatprep.subr.bf16.mxu0 0
    %2027 = vmatpush1.bf16.msra.mxu0 %v1391
    %2028 = vmatprep.subr.bf16.mxu0 0
    %2029 = vmatpush1.bf16.msra.mxu0 %v1390
    %2030 = vmatprep.subr.bf16.mxu0 0
    %2031 = vmatpush1.bf16.msra.mxu0 %v1389
    %2032 = vmatprep.subr.bf16.mxu0 0
    %2033 = vmatpush1.bf16.msra.mxu0 %v1388
    %2034 = vmatprep.subr.bf16.mxu0 0
    %2035 = vmatpush2.bf16.msra.mxu0 %v1403
    %2036 = vmatprep.subr.bf16.mxu0 0
    %2037 = vmatpush2.bf16.msra.mxu0 %v1402
    %2038 = vmatprep.subr.bf16.mxu0 0
    %2039 = vmatpush2.bf16.msra.mxu0 %v1401
    %2040 = vmatprep.subr.bf16.mxu0 0
    %2041 = vmatpush2.bf16.msra.mxu0 %v1400
    %2042 = vmatprep.subr.bf16.mxu0 0
    %2043 = vmatpush2.bf16.msra.mxu0 %v1399
    %2044 = vmatprep.subr.bf16.mxu0 0
    %2045 = vmatpush2.bf16.msra.mxu0 %v1398
    %2046 = vmatprep.subr.bf16.mxu0 0
    %2047 = vmatpush2.bf16.msra.mxu0 %v1397
    %2048 = vmatprep.subr.bf16.mxu0 0
    %2049 = vmatpush2.bf16.msra.mxu0 %v1396
    %2050 = vmatprep.mubr.bf16.mxu0 %v719
    %2051 = vmatmul.mubr.bf16.gmra.mxu0 %v718
    %v2052 = vpop.f32.mrf.mxu0
    %v2053 = vadd.f32 %v1956, %v2052
    %v2054 = vpop.f32.mrf.mxu0
    %v2055 = vpop.f32.mrf.mxu0
    %v2056 = vadd.f32 %v1959, %v2055
    %v2057 = vpop.f32.mrf.mxu0
    %2058 = vmatprep.mubr.bf16.mxu0 %v732
    %2059 = vmatmul.mubr.bf16.gmra.mxu0 %v731
    %v2060 = vpop.f32.mrf.mxu0
    %v2061 = vadd.f32 %v1964, %v2060
    %v2062 = vpop.f32.mrf.mxu0
    %v2063 = vpop.f32.mrf.mxu0
    %v2064 = vadd.f32 %v1967, %v2063
    %v2065 = vpop.f32.mrf.mxu0
    %2066 = vmatprep.mubr.bf16.mxu0 %v745
    %2067 = vmatmul.mubr.bf16.gmra.mxu0 %v744
    %v2068 = vpop.f32.mrf.mxu0
    %v2069 = vadd.f32 %v1972, %v2068
    %v2070 = vpop.f32.mrf.mxu0
    %v2071 = vpop.f32.mrf.mxu0
    %v2072 = vadd.f32 %v1975, %v2071
    %v2073 = vpop.f32.mrf.mxu0
    %2074 = vmatprep.mubr.bf16.mxu0 %v758
    %2075 = vmatmul.mubr.bf16.gmra.mxu0 %v757
    %v2076 = vpop.f32.mrf.mxu0
    %v2077 = vadd.f32 %v1980, %v2076
    %v2078 = vpop.f32.mrf.mxu0
    %v2079 = vpop.f32.mrf.mxu0
    %v2080 = vadd.f32 %v1983, %v2079
    %v2081 = vpop.f32.mrf.mxu0
    %2082 = vmatprep.mubr.bf16.mxu0 %v771
    %2083 = vmatmul.mubr.bf16.gmra.mxu0 %v770
    %v2084 = vpop.f32.mrf.mxu0
    %v2085 = vadd.f32 %v1988, %v2084
    %v2086 = vpop.f32.mrf.mxu0
    %v2087 = vpop.f32.mrf.mxu0
    %v2088 = vadd.f32 %v1991, %v2087
    %v2089 = vpop.f32.mrf.mxu0
    %2090 = vmatprep.mubr.bf16.mxu0 %v784
    %2091 = vmatmul.mubr.bf16.gmra.mxu0 %v783
    %v2092 = vpop.f32.mrf.mxu0
    %v2093 = vadd.f32 %v1996, %v2092
    %v2094 = vpop.f32.mrf.mxu0
    %v2095 = vpop.f32.mrf.mxu0
    %v2096 = vadd.f32 %v1999, %v2095
    %v2097 = vpop.f32.mrf.mxu0
    %2098 = vmatprep.mubr.bf16.mxu0 %v797
    %2099 = vmatmul.mubr.bf16.gmra.mxu0 %v796
    %v2100 = vpop.f32.mrf.mxu0
    %v2101 = vadd.f32 %v2004, %v2100
    %v2102 = vpop.f32.mrf.mxu0
    %v2103 = vpop.f32.mrf.mxu0
    %v2104 = vadd.f32 %v2007, %v2103
    %v2105 = vpop.f32.mrf.mxu0
    %2106 = vmatprep.mubr.bf16.mxu0 %v810
    %2107 = vmatmul.mubr.bf16.gmra.mxu0 %v809
    %v2108 = vpop.f32.mrf.mxu0
    %v2109 = vadd.f32 %v2012, %v2108
    %v2110 = vpop.f32.mrf.mxu0
    %v2111 = vpop.f32.mrf.mxu0
    %v2112 = vadd.f32 %v2015, %v2111
    %v2113 = vpop.f32.mrf.mxu0
    %2114 = vdwg.mxu0
    %2115 = vmatprep.subr.bf16.mxu0 0
    %2116 = vmatpush1.bf16.msra.mxu0 0
    %2117 = vmatprep.subr.bf16.mxu0 0
    %2118 = vmatpush1.bf16.msra.mxu0 0
    %2119 = vmatprep.subr.bf16.mxu0 0
    %2120 = vmatpush1.bf16.msra.mxu0 0
    %2121 = vmatprep.subr.bf16.mxu0 0
    %2122 = vmatpush1.bf16.msra.mxu0 0
    %2123 = vmatprep.subr.bf16.mxu0 0
    %2124 = vmatpush1.bf16.msra.mxu0 %v1407
    %2125 = vmatprep.subr.bf16.mxu0 0
    %2126 = vmatpush1.bf16.msra.mxu0 %v1406
    %2127 = vmatprep.subr.bf16.mxu0 0
    %2128 = vmatpush1.bf16.msra.mxu0 %v1405
    %2129 = vmatprep.subr.bf16.mxu0 0
    %2130 = vmatpush1.bf16.msra.mxu0 %v1404
    %2131 = vmatprep.subr.bf16.mxu0 0
    %2132 = vmatpush2.bf16.msra.mxu0 0
    %2133 = vmatprep.subr.bf16.mxu0 0
    %2134 = vmatpush2.bf16.msra.mxu0 0
    %2135 = vmatprep.subr.bf16.mxu0 0
    %2136 = vmatpush2.bf16.msra.mxu0 0
    %2137 = vmatprep.subr.bf16.mxu0 0
    %2138 = vmatpush2.bf16.msra.mxu0 0
    %2139 = vmatprep.subr.bf16.mxu0 0
    %2140 = vmatpush2.bf16.msra.mxu0 0
    %2141 = vmatprep.subr.bf16.mxu0 0
    %2142 = vmatpush2.bf16.msra.mxu0 0
    %2143 = vmatprep.subr.bf16.mxu0 0
    %2144 = vmatpush2.bf16.msra.mxu0 0
    %2145 = vmatprep.subr.bf16.mxu0 0
    %2146 = vmatpush2.bf16.msra.mxu0 0
    %2147 = vmatprep.mubr.bf16.mxu0 0
    %2148 = vmatmul.mubr.bf16.gmra.mxu0 %v1510
    %v2149 = vpop.f32.mrf.mxu0
    %v2150 = vadd.f32 %v2053, %v2149
    %v2151 = vpop.f32.mrf.mxu0
    %v2152 = vpop.f32.mrf.mxu0
    %v2153 = vadd.f32 %v2056, %v2152
    %v2154 = vpop.f32.mrf.mxu0
    %2155 = vmatprep.mubr.bf16.mxu0 0
    %2156 = vmatmul.mubr.bf16.gmra.mxu0 %v1513
    %v2157 = vpop.f32.mrf.mxu0
    %v2158 = vadd.f32 %v2061, %v2157
    %v2159 = vpop.f32.mrf.mxu0
    %v2160 = vpop.f32.mrf.mxu0
    %v2161 = vadd.f32 %v2064, %v2160
    %v2162 = vpop.f32.mrf.mxu0
    %2163 = vmatprep.mubr.bf16.mxu0 0
    %2164 = vmatmul.mubr.bf16.gmra.mxu0 %v1516
    %v2165 = vpop.f32.mrf.mxu0
    %v2166 = vadd.f32 %v2069, %v2165
    %v2167 = vpop.f32.mrf.mxu0
    %v2168 = vpop.f32.mrf.mxu0
    %v2169 = vadd.f32 %v2072, %v2168
    %v2170 = vpop.f32.mrf.mxu0
    %2171 = vmatprep.mubr.bf16.mxu0 0
    %2172 = vmatmul.mubr.bf16.gmra.mxu0 %v1519
    %v2173 = vpop.f32.mrf.mxu0
    %v2174 = vadd.f32 %v2077, %v2173
    %v2175 = vpop.f32.mrf.mxu0
    %v2176 = vpop.f32.mrf.mxu0
    %v2177 = vadd.f32 %v2080, %v2176
    %v2178 = vpop.f32.mrf.mxu0
    %2179 = vmatprep.mubr.bf16.mxu0 0
    %2180 = vmatmul.mubr.bf16.gmra.mxu0 %v1522
    %v2181 = vpop.f32.mrf.mxu0
    %v2182 = vadd.f32 %v2085, %v2181
    %v2183 = vpop.f32.mrf.mxu0
    %v2184 = vpop.f32.mrf.mxu0
    %v2185 = vadd.f32 %v2088, %v2184
    %v2186 = vpop.f32.mrf.mxu0
    %2187 = vmatprep.mubr.bf16.mxu0 0
    %2188 = vmatmul.mubr.bf16.gmra.mxu0 %v1525
    %v2189 = vpop.f32.mrf.mxu0
    %v2190 = vadd.f32 %v2093, %v2189
    %v2191 = vpop.f32.mrf.mxu0
    %v2192 = vpop.f32.mrf.mxu0
    %v2193 = vadd.f32 %v2096, %v2192
    %v2194 = vpop.f32.mrf.mxu0
    %2195 = vmatprep.mubr.bf16.mxu0 0
    %2196 = vmatmul.mubr.bf16.gmra.mxu0 %v1528
    %v2197 = vpop.f32.mrf.mxu0
    %v2198 = vadd.f32 %v2101, %v2197
    %v2199 = vpop.f32.mrf.mxu0
    %v2200 = vpop.f32.mrf.mxu0
    %v2201 = vadd.f32 %v2104, %v2200
    %v2202 = vpop.f32.mrf.mxu0
    %2203 = vmatprep.mubr.bf16.mxu0 0
    %2204 = vmatmul.mubr.bf16.gmra.mxu0 %v1531
    %v2205 = vpop.f32.mrf.mxu0
    %v2206 = vadd.f32 %v2109, %v2205
    %v2207 = vpop.f32.mrf.mxu0
    %v2208 = vpop.f32.mrf.mxu0
    %v2209 = vadd.f32 %v2112, %v2208
    %v2210 = vpop.f32.mrf.mxu0
    %2211 = vdwg.mxu0
    %v2212 = vmax.f32 %v2150, 0.0
    %v2213 = vmax.f32 %v2153, 0.0
    %v2214 = vmax.f32 %v2158, 0.0
    %v2215 = vmax.f32 %v2161, 0.0
    %v2216 = vmax.f32 %v2166, 0.0
    %v2217 = vmax.f32 %v2169, 0.0
    %v2218 = vmax.f32 %v2174, 0.0
    %v2219 = vmax.f32 %v2177, 0.0
    %v2220 = vmax.f32 %v2182, 0.0
    %v2221 = vmax.f32 %v2185, 0.0
    %v2222 = vmax.f32 %v2190, 0.0
    %v2223 = vmax.f32 %v2193, 0.0
    %v2224 = vmax.f32 %v2198, 0.0
    %v2225 = vmax.f32 %v2201, 0.0
    %v2226 = vmax.f32 %v2206, 0.0
    %v2227 = vmax.f32 %v2209, 0.0
    %v2228 = vpack.c.bf16 %v2213, %v2212
    %v2229 = vpack.c.bf16 %v2215, %v2214
    %v2230 = vpack.c.bf16 %v2217, %v2216
    %v2231 = vpack.c.bf16 %v2219, %v2218
    %v2232 = vpack.c.bf16 %v2221, %v2220
    %v2233 = vpack.c.bf16 %v2223, %v2222
    %v2234 = vpack.c.bf16 %v2225, %v2224
    %v2235 = vpack.c.bf16 %v2227, %v2226
    %v2236 = vld [vmem:[#allocation7] sm:$0xf]
    %v2237 = vld [vmem:[#allocation7 + $0x4] sm:$0xf]
    %v2238 = vld [vmem:[#allocation7 + $0x8] sm:$0xf]
    %v2239 = vld [vmem:[#allocation7 + $0xc] sm:$0xf]
    %v2240 = vld [vmem:[#allocation7 + $0x10] sm:$0xf]
    %v2241 = vld [vmem:[#allocation7 + $0x14] sm:$0xf]
    %v2242 = vld [vmem:[#allocation7 + $0x18] sm:$0xf]
    %v2243 = vld [vmem:[#allocation7 + $0x1c] sm:$0xf]
    %v2244 = vld [vmem:[#allocation7 + $0x20] sm:$0xf]
    %v2245 = vld [vmem:[#allocation7 + $0x24] sm:$0xf]
    %v2246 = vld [vmem:[#allocation7 + $0x28] sm:$0xf]
    %v2247 = vld [vmem:[#allocation7 + $0x2c] sm:$0xf]
    %v2248 = vld [vmem:[#allocation7 + $0x30] sm:$0xf]
    %v2249 = vld [vmem:[#allocation7 + $0x34] sm:$0xf]
    %v2250 = vld [vmem:[#allocation7 + $0x38] sm:$0xf]
    %v2251 = vld [vmem:[#allocation7 + $0x3c] sm:$0xf]
    %v2252 = vld [vmem:[%s4] sm:$0x1]
    %v2254 = vlaneseq
    %v2255 = vshrl.u32 %v2254, 7
    %v2256 = vsub.s32 0, %v2255
    %v2257 = vrot.slane %v2252, %v2256
    %v2275 = vunpack.c.l.b16 %v2236
    %v2276 = vunpack.c.l.b16 %v2237
    %v2277 = vunpack.c.l.b16 %v2238
    %v2278 = vunpack.c.l.b16 %v2239
    %v2279 = vunpack.c.l.b16 %v2240
    %v2280 = vunpack.c.l.b16 %v2241
    %v2281 = vunpack.c.l.b16 %v2242
    %v2282 = vunpack.c.l.b16 %v2243
    %v2283 = vunpack.c.l.b16 %v2244
    %v2284 = vunpack.c.l.b16 %v2245
    %v2285 = vunpack.c.l.b16 %v2246
    %v2286 = vunpack.c.l.b16 %v2247
    %v2287 = vunpack.c.l.b16 %v2248
    %v2288 = vunpack.c.l.b16 %v2249
    %v2289 = vunpack.c.l.b16 %v2250
    %v2290 = vunpack.c.l.b16 %v2251
    %v2291 = vpack.c.b16 %v2276, %v2275
    %v2292 = vpack.c.b16 %v2278, %v2277
    %v2293 = vpack.c.b16 %v2280, %v2279
    %v2294 = vpack.c.b16 %v2282, %v2281
    %v2295 = vpack.c.b16 %v2284, %v2283
    %v2296 = vpack.c.b16 %v2286, %v2285
    %v2297 = vpack.c.b16 %v2288, %v2287
    %v2298 = vpack.c.b16 %v2290, %v2289
    %2307 = vmatprep.subr.bf16.mxu0 0
    %2308 = vmatpush1.bf16.msra.mxu0 %v2298
    %2309 = vmatprep.subr.bf16.mxu0 0
    %2310 = vmatpush1.bf16.msra.mxu0 %v2297
    %2311 = vmatprep.subr.bf16.mxu0 0
    %2312 = vmatpush1.bf16.msra.mxu0 %v2296
    %2313 = vmatprep.subr.bf16.mxu0 0
    %2314 = vmatpush1.bf16.msra.mxu0 %v2295
    %2315 = vmatprep.subr.bf16.mxu0 0
    %2316 = vmatpush1.bf16.msra.mxu0 %v2294
    %2317 = vmatprep.subr.bf16.mxu0 0
    %2318 = vmatpush1.bf16.msra.mxu0 %v2293
    %2319 = vmatprep.subr.bf16.mxu0 0
    %2320 = vmatpush1.bf16.msra.mxu0 %v2292
    %2321 = vmatprep.subr.bf16.mxu0 0
    %2322 = vmatpush1.bf16.msra.mxu0 %v2291
    %2323 = vmatprep.subr.bf16.mxu0 0
    %2324 = vmatpush2.bf16.msra.mxu0 0
    %2325 = vmatprep.subr.bf16.mxu0 0
    %2326 = vmatpush2.bf16.msra.mxu0 0
    %2327 = vmatprep.subr.bf16.mxu0 0
    %2328 = vmatpush2.bf16.msra.mxu0 0
    %2329 = vmatprep.subr.bf16.mxu0 0
    %2330 = vmatpush2.bf16.msra.mxu0 0
    %2331 = vmatprep.subr.bf16.mxu0 0
    %2332 = vmatpush2.bf16.msra.mxu0 0
    %2333 = vmatprep.subr.bf16.mxu0 0
    %2334 = vmatpush2.bf16.msra.mxu0 0
    %2335 = vmatprep.subr.bf16.mxu0 0
    %2336 = vmatpush2.bf16.msra.mxu0 0
    %2337 = vmatprep.subr.bf16.mxu0 0
    %2338 = vmatpush2.bf16.msra.mxu0 0
    %2339 = vmatprep.mubr.bf16.mxu0 0
    %2340 = vmatmul.mubr.bf16.gmra.mxu0 %v2228
    %v2341 = vpop.f32.mrf.mxu0
    %v2342 = vadd.f32 %v2257, %v2341
    %v2343 = vpop.f32.mrf.mxu0
    %v2344 = vpop.f32.mrf.mxu0
    %v2345 = vadd.f32 %v2257, %v2344
    %v2346 = vpop.f32.mrf.mxu0
    %2347 = vmatprep.mubr.bf16.mxu0 0
    %2348 = vmatmul.mubr.bf16.gmra.mxu0 %v2229
    %v2349 = vpop.f32.mrf.mxu0
    %v2350 = vadd.f32 %v2257, %v2349
    %v2351 = vpop.f32.mrf.mxu0
    %v2352 = vpop.f32.mrf.mxu0
    %v2353 = vadd.f32 %v2257, %v2352
    %v2354 = vpop.f32.mrf.mxu0
    %2355 = vmatprep.mubr.bf16.mxu0 0
    %2356 = vmatmul.mubr.bf16.gmra.mxu0 %v2230
    %v2357 = vpop.f32.mrf.mxu0
    %v2358 = vadd.f32 %v2257, %v2357
    %v2359 = vpop.f32.mrf.mxu0
    %v2360 = vpop.f32.mrf.mxu0
    %v2361 = vadd.f32 %v2257, %v2360
    %v2362 = vpop.f32.mrf.mxu0
    %2363 = vmatprep.mubr.bf16.mxu0 0
    %2364 = vmatmul.mubr.bf16.gmra.mxu0 %v2231
    %v2365 = vpop.f32.mrf.mxu0
    %v2366 = vadd.f32 %v2257, %v2365
    %v2367 = vpop.f32.mrf.mxu0
    %v2368 = vpop.f32.mrf.mxu0
    %v2369 = vadd.f32 %v2257, %v2368
    %v2370 = vpop.f32.mrf.mxu0
    %2371 = vmatprep.mubr.bf16.mxu0 0
    %2372 = vmatmul.mubr.bf16.gmra.mxu0 %v2232
    %v2373 = vpop.f32.mrf.mxu0
    %v2374 = vadd.f32 %v2257, %v2373
    %v2375 = vpop.f32.mrf.mxu0
    %v2376 = vpop.f32.mrf.mxu0
    %v2377 = vadd.f32 %v2257, %v2376
    %v2378 = vpop.f32.mrf.mxu0
    %2379 = vmatprep.mubr.bf16.mxu0 0
    %2380 = vmatmul.mubr.bf16.gmra.mxu0 %v2233
    %v2381 = vpop.f32.mrf.mxu0
    %v2382 = vadd.f32 %v2257, %v2381
    %v2383 = vpop.f32.mrf.mxu0
    %v2384 = vpop.f32.mrf.mxu0
    %v2385 = vadd.f32 %v2257, %v2384
    %v2386 = vpop.f32.mrf.mxu0
    %2387 = vmatprep.mubr.bf16.mxu0 0
    %2388 = vmatmul.mubr.bf16.gmra.mxu0 %v2234
    %v2389 = vpop.f32.mrf.mxu0
    %v2390 = vadd.f32 %v2257, %v2389
    %v2391 = vpop.f32.mrf.mxu0
    %v2392 = vpop.f32.mrf.mxu0
    %v2393 = vadd.f32 %v2257, %v2392
    %v2394 = vpop.f32.mrf.mxu0
    %2395 = vmatprep.mubr.bf16.mxu0 0
    %2396 = vmatmul.mubr.bf16.gmra.mxu0 %v2235
    %v2397 = vpop.f32.mrf.mxu0
    %v2398 = vadd.f32 %v2257, %v2397
    %v2399 = vpop.f32.mrf.mxu0
    %v2400 = vpop.f32.mrf.mxu0
    %v2401 = vadd.f32 %v2257, %v2400
    %v2402 = vpop.f32.mrf.mxu0
    %2403 = vdwg.mxu0
    %v2404 = vmax.f32 %v2342, 0.0
    %v2405 = vmax.f32 %v2345, 0.0
    %v2406 = vmax.f32 %v2350, 0.0
    %v2407 = vmax.f32 %v2353, 0.0
    %v2408 = vmax.f32 %v2358, 0.0
    %v2409 = vmax.f32 %v2361, 0.0
    %v2410 = vmax.f32 %v2366, 0.0
    %v2411 = vmax.f32 %v2369, 0.0
    %v2412 = vmax.f32 %v2374, 0.0
    %v2413 = vmax.f32 %v2377, 0.0
    %v2414 = vmax.f32 %v2382, 0.0
    %v2415 = vmax.f32 %v2385, 0.0
    %v2416 = vmax.f32 %v2390, 0.0
    %v2417 = vmax.f32 %v2393, 0.0
    %v2418 = vmax.f32 %v2398, 0.0
    %v2419 = vmax.f32 %v2401, 0.0
    %v2420 = vld [vmem:[%s5] sm:$0x1]
    %v2422 = vlaneseq
    %v2423 = vshrl.u32 %v2422, 7
    %v2424 = vsub.s32 0, %v2423
    %v2425 = vrot.slane %v2420, %v2424
    %v2427 = vmul.f32 %v2404, %v2425
    %v2428 = vmul.f32 %v2405, %v2425
    %v2429 = vmul.f32 %v2406, %v2425
    %v2430 = vmul.f32 %v2407, %v2425
    %v2431 = vmul.f32 %v2408, %v2425
    %v2432 = vmul.f32 %v2409, %v2425
    %v2433 = vmul.f32 %v2410, %v2425
    %v2434 = vmul.f32 %v2411, %v2425
    %v2435 = vmul.f32 %v2412, %v2425
    %v2436 = vmul.f32 %v2413, %v2425
    %v2437 = vmul.f32 %v2414, %v2425
    %v2438 = vmul.f32 %v2415, %v2425
    %v2439 = vmul.f32 %v2416, %v2425
    %v2440 = vmul.f32 %v2417, %v2425
    %v2441 = vmul.f32 %v2418, %v2425
    %v2442 = vmul.f32 %v2419, %v2425
    %2443 = vadd.xlane.f32.xlu0 %v2427
    %v2444 = vpop.xlane.xlu0 %2443
    %2445 = vadd.xlane.f32.xlu0 %v2428
    %v2446 = vpop.xlane.xlu0 %2445
    %2447 = vadd.xlane.f32.xlu0 %v2429
    %v2448 = vpop.xlane.xlu0 %2447
    %2449 = vadd.xlane.f32.xlu0 %v2430
    %v2450 = vpop.xlane.xlu0 %2449
    %2451 = vadd.xlane.f32.xlu0 %v2431
    %v2452 = vpop.xlane.xlu0 %2451
    %2453 = vadd.xlane.f32.xlu0 %v2432
    %v2454 = vpop.xlane.xlu0 %2453
    %2455 = vadd.xlane.f32.xlu0 %v2433
    %v2456 = vpop.xlane.xlu0 %2455
    %2457 = vadd.xlane.f32.xlu0 %v2434
    %v2458 = vpop.xlane.xlu0 %2457
    %2459 = vadd.xlane.f32.xlu0 %v2435
    %v2460 = vpop.xlane.xlu0 %2459
    %2461 = vadd.xlane.f32.xlu0 %v2436
    %v2462 = vpop.xlane.xlu0 %2461
    %2463 = vadd.xlane.f32.xlu0 %v2437
    %v2464 = vpop.xlane.xlu0 %2463
    %2465 = vadd.xlane.f32.xlu0 %v2438
    %v2466 = vpop.xlane.xlu0 %2465
    %2467 = vadd.xlane.f32.xlu0 %v2439
    %v2468 = vpop.xlane.xlu0 %2467
    %2469 = vadd.xlane.f32.xlu0 %v2440
    %v2470 = vpop.xlane.xlu0 %2469
    %2471 = vadd.xlane.f32.xlu0 %v2441
    %v2472 = vpop.xlane.xlu0 %2471
    %2473 = vadd.xlane.f32.xlu0 %v2442
    %v2474 = vpop.xlane.xlu0 %2473
    %s2475 = sld [smem:[#allocation2]]
    %v2476 = vstv %s2475
    %v2477 = vadd.f32 %v2444, %v2476
    %v2478 = vadd.f32 %v2446, %v2476
    %v2479 = vadd.f32 %v2448, %v2476
    %v2480 = vadd.f32 %v2450, %v2476
    %v2481 = vadd.f32 %v2452, %v2476
    %v2482 = vadd.f32 %v2454, %v2476
    %v2483 = vadd.f32 %v2456, %v2476
    %v2484 = vadd.f32 %v2458, %v2476
    %v2485 = vadd.f32 %v2460, %v2476
    %v2486 = vadd.f32 %v2462, %v2476
    %v2487 = vadd.f32 %v2464, %v2476
    %v2488 = vadd.f32 %v2466, %v2476
    %v2489 = vadd.f32 %v2468, %v2476
    %v2490 = vadd.f32 %v2470, %v2476
    %v2491 = vadd.f32 %v2472, %v2476
    %v2492 = vadd.f32 %v2474, %v2476
    %v2493 = vxor.u32 %v2477, 2147483648
    %v2494 = vxor.u32 %v2478, 2147483648
    %v2495 = vxor.u32 %v2479, 2147483648
    %v2496 = vxor.u32 %v2480, 2147483648
    %v2497 = vxor.u32 %v2481, 2147483648
    %v2498 = vxor.u32 %v2482, 2147483648
    %v2499 = vxor.u32 %v2483, 2147483648
    %v2500 = vxor.u32 %v2484, 2147483648
    %v2501 = vxor.u32 %v2485, 2147483648
    %v2502 = vxor.u32 %v2486, 2147483648
    %v2503 = vxor.u32 %v2487, 2147483648
    %v2504 = vxor.u32 %v2488, 2147483648
    %v2505 = vxor.u32 %v2489, 2147483648
    %v2506 = vxor.u32 %v2490, 2147483648
    %v2507 = vxor.u32 %v2491, 2147483648
    %v2508 = vxor.u32 %v2492, 2147483648
    %v2509 = vmul.f32 %v2493, 1.442695
    %v2510 = vpow.pop %v2509
    %v2511 = vmul.f32 %v2494, 1.442695
    %v2512 = vpow.pop %v2511
    %v2513 = vmul.f32 %v2495, 1.442695
    %v2514 = vpow.pop %v2513
    %v2515 = vmul.f32 %v2496, 1.442695
    %v2516 = vpow.pop %v2515
    %v2517 = vmul.f32 %v2497, 1.442695
    %v2518 = vpow.pop %v2517
    %v2519 = vmul.f32 %v2498, 1.442695
    %v2520 = vpow.pop %v2519
    %v2521 = vmul.f32 %v2499, 1.442695
    %v2522 = vpow.pop %v2521
    %v2523 = vmul.f32 %v2500, 1.442695
    %v2524 = vpow.pop %v2523
    %v2525 = vmul.f32 %v2501, 1.442695
    %v2526 = vpow.pop %v2525
    %v2527 = vmul.f32 %v2502, 1.442695
    %v2528 = vpow.pop %v2527
    %v2529 = vmul.f32 %v2503, 1.442695
    %v2530 = vpow.pop %v2529
    %v2531 = vmul.f32 %v2504, 1.442695
    %v2532 = vpow.pop %v2531
    %v2533 = vmul.f32 %v2505, 1.442695
    %v2534 = vpow.pop %v2533
    %v2535 = vmul.f32 %v2506, 1.442695
    %v2536 = vpow.pop %v2535
    %v2537 = vmul.f32 %v2507, 1.442695
    %v2538 = vpow.pop %v2537
    %v2539 = vmul.f32 %v2508, 1.442695
    %v2540 = vpow.pop %v2539
    %v2541 = vadd.f32 %v2510, 1.0
    %v2542 = vadd.f32 %v2512, 1.0
    %v2543 = vadd.f32 %v2514, 1.0
    %v2544 = vadd.f32 %v2516, 1.0
    %v2545 = vadd.f32 %v2518, 1.0
    %v2546 = vadd.f32 %v2520, 1.0
    %v2547 = vadd.f32 %v2522, 1.0
    %v2548 = vadd.f32 %v2524, 1.0
    %v2549 = vadd.f32 %v2526, 1.0
    %v2550 = vadd.f32 %v2528, 1.0
    %v2551 = vadd.f32 %v2530, 1.0
    %v2552 = vadd.f32 %v2532, 1.0
    %v2553 = vadd.f32 %v2534, 1.0
    %v2554 = vadd.f32 %v2536, 1.0
    %v2555 = vadd.f32 %v2538, 1.0
    %v2556 = vadd.f32 %v2540, 1.0
    %v2557 = vrcp.pop %v2541
    %v2558 = vmul.f32 1.0, %v2557
    %v2559 = vrcp.pop %v2542
    %v2560 = vmul.f32 1.0, %v2559
    %v2561 = vrcp.pop %v2543
    %v2562 = vmul.f32 1.0, %v2561
    %v2563 = vrcp.pop %v2544
    %v2564 = vmul.f32 1.0, %v2563
    %v2565 = vrcp.pop %v2545
    %v2566 = vmul.f32 1.0, %v2565
    %v2567 = vrcp.pop %v2546
    %v2568 = vmul.f32 1.0, %v2567
    %v2569 = vrcp.pop %v2547
    %v2570 = vmul.f32 1.0, %v2569
    %v2571 = vrcp.pop %v2548
    %v2572 = vmul.f32 1.0, %v2571
    %v2573 = vrcp.pop %v2549
    %v2574 = vmul.f32 1.0, %v2573
    %v2575 = vrcp.pop %v2550
    %v2576 = vmul.f32 1.0, %v2575
    %v2577 = vrcp.pop %v2551
    %v2578 = vmul.f32 1.0, %v2577
    %v2579 = vrcp.pop %v2552
    %v2580 = vmul.f32 1.0, %v2579
    %v2581 = vrcp.pop %v2553
    %v2582 = vmul.f32 1.0, %v2581
    %v2583 = vrcp.pop %v2554
    %v2584 = vmul.f32 1.0, %v2583
    %v2585 = vrcp.pop %v2555
    %v2586 = vmul.f32 1.0, %v2585
    %v2587 = vrcp.pop %v2556
    %v2588 = vmul.f32 1.0, %v2587
    %vm2589 = vcmask 7168
    %2590 = vst.msk [vmem:[#allocation8] sm:$0xff] %vm2589, %v2558
    %2591 = vst.msk [vmem:[#allocation8 + $0x8] sm:$0xff] %vm2589, %v2560
    %2592 = vst.msk [vmem:[#allocation8 + $0x10] sm:$0xff] %vm2589, %v2562
    %2593 = vst.msk [vmem:[#allocation8 + $0x18] sm:$0xff] %vm2589, %v2564
    %2594 = vst.msk [vmem:[#allocation8 + $0x20] sm:$0xff] %vm2589, %v2566
    %2595 = vst.msk [vmem:[#allocation8 + $0x28] sm:$0xff] %vm2589, %v2568
    %2596 = vst.msk [vmem:[#allocation8 + $0x30] sm:$0xff] %vm2589, %v2570
    %2597 = vst.msk [vmem:[#allocation8 + $0x38] sm:$0xff] %vm2589, %v2572
    %2598 = vst.msk [vmem:[#allocation8 + $0x40] sm:$0xff] %vm2589, %v2574
    %2599 = vst.msk [vmem:[#allocation8 + $0x48] sm:$0xff] %vm2589, %v2576
    %2600 = vst.msk [vmem:[#allocation8 + $0x50] sm:$0xff] %vm2589, %v2578
    %2601 = vst.msk [vmem:[#allocation8 + $0x58] sm:$0xff] %vm2589, %v2580
    %2602 = vst.msk [vmem:[#allocation8 + $0x60] sm:$0xff] %vm2589, %v2582
    %2603 = vst.msk [vmem:[#allocation8 + $0x68] sm:$0xff] %vm2589, %v2584
    %2604 = vst.msk [vmem:[#allocation8 + $0x70] sm:$0xff] %vm2589, %v2586
    %2605 = vst.msk [vmem:[#allocation8 + $0x78] sm:$0xff] %vm2589, %v2588
    // Predicated region
    $region42: #{tpu_custom_call.1} parent=1 // pred_check
      _
    $region43: #{tpu_custom_call.1} parent=1 // pred_check_branch
      %2607 = sbr.rel (0) target = $region45
    $region44: #{tpu_custom_call.1} parent=1 // pred_region
      // Predicated region
      $region46: #{tpu_custom_call.1} parent=44 // pred_check
        _
      $region47: #{tpu_custom_call.1} parent=44 // pred_check_branch
        %2609 = sbr.rel (0) target = $region49
      $region48: #{tpu_custom_call.1} parent=44 // pred_region
        // Predicated region
        $region50: #{tpu_custom_call.1} parent=48 // pred_check
          _
        $region51: #{tpu_custom_call.1} parent=48 // pred_check_branch
          %2611 = sbr.rel (0) target = $region53
        $region52: #{tpu_custom_call.1} parent=48 // pred_region
          // Predicated region
          $region65: #{tpu_custom_call.1} parent=52 // pred_check
            _
          $region66: #{tpu_custom_call.1} parent=52 // pred_check_branch
            %2627 = sbr.rel (0) target = $region68
          $region67: #{tpu_custom_call.1} parent=52 // pred_region
            loop: start=0, step=1, limit=1
            $region69: #{tpu_custom_call.1} parent=67 // loop_pre_header
              _
            $region70: #{tpu_custom_call.1} parent=67 // loop_header
              %s2629 = sphi 0, %s2633
              %p2630 = scmp.ge.s32.totalorder %s2629, 1
              %s2634 = sphi [#allocation8], [#allocation8]
              %s2635 = sphi %s7, %s7
            $region71: #{tpu_custom_call.1} parent=67 // loop_header_branch
              %2632 = sbr.rel (%p2630) target = $region75
            $region72: #{tpu_custom_call.1} parent=67 // loop_body
              %v2636 = vld [vmem:[%s2634] sm:$0xff]
              %2637 = vst [vmem:[%s2635] sm:$0xff] %v2636
            $region73: #{tpu_custom_call.1} parent=67 // loop_footer
              %s2633 = sadd.s32 1, %s2629
            $region74: #{tpu_custom_call.1} parent=67 // loop_footer_branch
              %2628 = sbr.rel target = $region70
            $region75: #{tpu_custom_call.1} parent=67 // loop_exit
              _
          $region68: #{tpu_custom_call.1} parent=52 // pred_fallthru
            _
          // Predicated region
          $region76: #{tpu_custom_call.1} parent=52 // pred_check
            _
          $region77: #{tpu_custom_call.1} parent=52 // pred_check_branch
            %2639 = sbr.rel target = $region79
          $region78: #{tpu_custom_call.1} parent=52 // pred_region
            _
          $region79: #{tpu_custom_call.1} parent=52 // pred_fallthru
            _
        $region53: #{tpu_custom_call.1} parent=48 // pred_fallthru
          _
        // Predicated region
        $region54: #{tpu_custom_call.1} parent=48 // pred_check
          _
        $region55: #{tpu_custom_call.1} parent=48 // pred_check_branch
          %2613 = sbr.rel target = $region57
        $region56: #{tpu_custom_call.1} parent=48 // pred_region
          %s2615 = ssub.s32 256, 1
          loop: start=0, step=1, limit=1
          $region58: #{tpu_custom_call.1} parent=56 // loop_pre_header
            _
          $region59: #{tpu_custom_call.1} parent=56 // loop_header
            %s2617 = sphi 0, %s2621
            %p2618 = scmp.ge.s32.totalorder %s2617, 1
            %s2622 = sphi [#allocation8], [#allocation8]
            %s2623 = sphi %s7, %s7
          $region60: #{tpu_custom_call.1} parent=56 // loop_header_branch
            %2620 = sbr.rel (%p2618) target = $region64
          $region61: #{tpu_custom_call.1} parent=56 // loop_body
            %v2624 = vld [vmem:[%s2622] sm:%s2615]
            %2625 = vst [vmem:[%s2623] sm:%s2615] %v2624
          $region62: #{tpu_custom_call.1} parent=56 // loop_footer
            %s2621 = sadd.s32 1, %s2617
          $region63: #{tpu_custom_call.1} parent=56 // loop_footer_branch
            %2616 = sbr.rel target = $region59
          $region64: #{tpu_custom_call.1} parent=56 // loop_exit
            _
        $region57: #{tpu_custom_call.1} parent=48 // pred_fallthru
          _
      $region49: #{tpu_custom_call.1} parent=44 // pred_fallthru
        _
      %2640 = vnop
    $region45: #{tpu_custom_call.1} parent=1 // pred_fallthru
      _
    // Predicated region
    $region80: #{tpu_custom_call.1} parent=1 // pred_check
      _
    $region81: #{tpu_custom_call.1} parent=1 // pred_check_branch
      %2642 = sbr.rel (0) target = $region83
    $region82: #{tpu_custom_call.1} parent=1 // pred_region
      _
    $region83: #{tpu_custom_call.1} parent=1 // pred_fallthru
      _
    %2643 = vsyncpa [#allocation4], 1
    %2644 = vsyncpa [#allocation6], 1

</llo_original>
